<compile_context>
chip_gen: v7x
topology: tpu7x:2x2x1
jax: 0.10.0
libtpu: 0.0.40
codegen_flags: <defaults>
</compile_context>

<pallas_src>
import functools

import jax
import jax.numpy as jnp
from jax.experimental import pallas as pl
from jax.experimental.pallas import tpu as pltpu


def _coupling_kernel(x_ref, w1_ref, b1_ref, w2s_ref, b2s_ref, w2t_ref, b2t_ref,
                     y_ref, logdet_ref, *, half, hidden):
    # Split the (TB, F) activation tile in VMEM (static, lane-aligned at 128).
    x1 = x_ref[:, :half]                                    # (TB, half) f32
    x2 = x_ref[:, half:]                                    # (TB, half) f32

    # Fused first layer for both nets: one (TB, half) @ (half, 2*hidden) MXU push,
    # bf16 operands, f32 accumulation.  Bias + ReLU fused, then cast once so the
    # (TB, 2*hidden) intermediate is stored at half width (bf16).
    h = jnp.maximum(
        jnp.dot(x1.astype(jnp.bfloat16), w1_ref[...],
                preferred_element_type=jnp.float32) + b1_ref[...],
        0.0,
    ).astype(jnp.bfloat16)

    # scale head: Linear -> Tanh
    s = jnp.tanh(jnp.dot(h[:, :hidden], w2s_ref[...],
                         preferred_element_type=jnp.float32) + b2s_ref[...])
    # translate head: Linear
    t = jnp.dot(h[:, hidden:], w2t_ref[...],
                preferred_element_type=jnp.float32) + b2t_ref[...]

    # Two direct lane-aligned full stores (no in-VMEM concat of the output tile).
    y_ref[:, :half] = x1
    y_ref[:, half:] = x2 * jnp.exp(s) + t

    # Lane-dense (1, TB) log-det row: sum_k s[j, k] via a ones-vector contraction
    # (q.k^T-style dot_general) so the result is produced lane-major directly,
    # avoiding both a masked (TB, 1) column store and a (TB,1)->(1,TB) relayout.
    logdet_ref[...] = jax.lax.dot_general(
        jnp.ones((1, half), jnp.float32), s,
        dimension_numbers=(((1,), (1,)), ((), ())),
        preferred_element_type=jnp.float32)


def _choose_tile(B, block_batch):
    """Pick (TB, Bp): batch tile and padded batch.

    Small batches run as a single tile (TB = B rounded up to 8 sublanes; every
    block then spans its full array dim, so no 128-multiple needed).  Larger
    batches use a 128-multiple TB <= block_batch, preferring zero padding and
    >= 2 grid steps (v7x megacore); if the best multi-tile option would waste
    more than ~25% of the rows on padding, fall back to a single tile.
    """
    b8 = -(-B // 8) * 8
    cap = (min(block_batch, b8) // 128) * 128
    if b8 < 256 or cap < 128:
        return b8, b8                       # single tile
    best_tb, best_pad = None, None
    for tb in range(cap, 0, -128):
        if tb >= B:                         # would collapse the grid to one step
            continue
        bp = -(-B // tb) * tb
        pad = bp - B
        if best_pad is None or pad < best_pad:
            best_tb, best_pad = tb, pad
    if best_tb is None or best_pad * 4 > B:
        return b8, b8                       # padding waste too high -> single tile
    return best_tb, B + best_pad


def prepare_coupling_params(params):
    """One-time weight prep, hoisted out of the per-call hot path.

    Fuses the first-layer weights/biases of the scale & translate nets and stores
    matmul weights in bf16 (weight DMA dominates at small batch).  Biases stay
    f32 and are added to the f32 MXU accumulator.
    """
    w1s, b1s, w2s, b2s, w1t, b1t, w2t, b2t = params
    half, hidden = w1s.shape
    w1 = jnp.concatenate([w1s, w1t], axis=1).astype(jnp.bfloat16)          # (half, 2H)
    b1 = jnp.concatenate([b1s, b1t]).reshape(1, 2 * hidden).astype(jnp.float32)
    return (w1, b1,
            w2s.astype(jnp.bfloat16), b2s.reshape(1, half).astype(jnp.float32),
            w2t.astype(jnp.bfloat16), b2t.reshape(1, half).astype(jnp.float32))


def coupling_layer_forward(x, prepared_params, *, block_batch=512):
    """x: (B, num_features) f32. Returns (y, log_det_jacobian) like the torch module.

    prepared_params: output of prepare_coupling_params (computed once at init).
    block_batch should be a multiple of 128 (>= 128); default 512.
    """
    B, F = x.shape
    assert F % 2 == 0
    half = F // 2
    w1, b1, w2s, b2s, w2t, b2t = prepared_params
    hidden = w2s.shape[0]
    assert w1.shape == (half, 2 * hidden)

    TB, Bp = _choose_tile(B, block_batch)
    if Bp != B:
        x = jnp.pad(x, ((0, Bp - B), (0, 0)))   # only on ragged batches (zero rows, finite math)

    grid = (Bp // TB,)
    const = lambda i: (0, 0)   # weights/biases: same block every step -> VMEM-resident

    kernel = functools.partial(_coupling_kernel, half=half, hidden=hidden)

    y, logdet = pl.pallas_call(
        kernel,
        grid=grid,
        in_specs=[
            pl.BlockSpec((TB, F), lambda i: (i, 0)),          # x  (batch-tiled)
            pl.BlockSpec((half, 2 * hidden), const),          # W1 (fused scale|translate)
            pl.BlockSpec((1, 2 * hidden), const),             # b1 (fused)
            pl.BlockSpec((hidden, half), const),              # W2s
            pl.BlockSpec((1, half), const),                   # b2s
            pl.BlockSpec((hidden, half), const),              # W2t
            pl.BlockSpec((1, half), const),                   # b2t
        ],
        out_specs=(
            pl.BlockSpec((TB, F), lambda i: (i, 0)),          # y
            pl.BlockSpec((1, TB), lambda i: (0, i)),          # log-det (lane-dense row)
        ),
        out_shape=(
            jax.ShapeDtypeStruct((Bp, F), jnp.float32),
            jax.ShapeDtypeStruct((1, Bp), jnp.float32),
        ),
        compiler_params=pltpu.CompilerParams(
            dimension_semantics=("parallel",),                # megacore-shardable batch axis
            vmem_limit_bytes=32 << 20,                        # headroom on v7x (64 MiB physical)
        ),
    )(x, w1, b1, w2s, b2s, w2t, b2t)

    logdet = logdet[0]
    if Bp != B:
        y = y[:B]
        logdet = logdet[:B]
    return y, logdet


def init_params(key, num_features, hidden=1024):
    """Deterministic synthetic params. Weights stored as (in, out) = W^T of torch Linear."""
    half = num_features // 2
    ks = jax.random.split(key, 8)
    scale1 = 1.0 / jnp.sqrt(half)
    scale2 = 1.0 / jnp.sqrt(hidden)
    w1s = jax.random.uniform(ks[0], (half, hidden), jnp.float32, -scale1, scale1)
    b1s = jax.random.uniform(ks[1], (hidden,), jnp.float32, -scale1, scale1)
    w2s = jax.random.uniform(ks[2], (hidden, half), jnp.float32, -scale2, scale2)
    b2s = jax.random.uniform(ks[3], (half,), jnp.float32, -scale2, scale2)
    w1t = jax.random.uniform(ks[4], (half, hidden), jnp.float32, -scale1, scale1)
    b1t = jax.random.uniform(ks[5], (hidden,), jnp.float32, -scale1, scale1)
    w2t = jax.random.uniform(ks[6], (hidden, half), jnp.float32, -scale2, scale2)
    b2t = jax.random.uniform(ks[7], (half,), jnp.float32, -scale2, scale2)
    return (w1s, b1s, w2s, b2s, w1t, b1t, w2t, b2t)


def _bf16_rounded_params(params):
    """Weights rounded to bf16 (what the kernel actually stores/multiplies by)."""
    w1s, b1s, w2s, b2s, w1t, b1t, w2t, b2t = params
    bf = lambda w: w.astype(jnp.bfloat16).astype(jnp.float32)
    return (bf(w1s), b1s, bf(w2s), b2s, bf(w1t), b1t, bf(w2t), b2t)


def reference_forward(x, params):
    """Pure-JAX f32 reference matching the PyTorch module."""
    w1s, b1s, w2s, b2s, w1t, b1t, w2t, b2t = params
    half = x.shape[1] // 2
    x1, x2 = x[:, :half], x[:, half:]
    s = jnp.tanh(jnp.maximum(x1 @ w1s + b1s, 0.0) @ w2s + b2s)
    t = jnp.maximum(x1 @ w1t + b1t, 0.0) @ w2t + b2t
    y = jnp.concatenate([x1, x2 * jnp.exp(s) + t], axis=1)
    return y, s.sum(-1)


if __name__ == "__main__":
    key = jax.random.PRNGKey(0)
    k_x, k_p = jax.random.split(key)

    num_features = 256            # -> half = 128 (lane aligned); hidden = 1024 per the module
    hidden = 1024
    params = init_params(k_p, num_features, hidden=hidden)
    prepared = prepare_coupling_params(params)      # hoisted weight prep (runs once)
    params_stored = _bf16_rounded_params(params)    # bf16 weights the kernel actually consumes

    half = num_features // 2
    cases = [
        # (input, kwargs): single-tile no-pad / single-tile + pad / 3 grid steps no-pad
        (jax.random.normal(k_x, (8, num_features), jnp.float32), {}),
        (jax.random.normal(jax.random.fold_in(k_x, 1), (20, num_features), jnp.float32), {}),
        (jax.random.normal(jax.random.fold_in(k_x, 2), (384, num_features), jnp.float32),
         dict(block_batch=512)),
    ]

    for x_in, kw in cases:
        y_out, ld_out = coupling_layer_forward(x_in, prepared, **kw)
        y_out = jax.block_until_ready(y_out)
        ld_out = jax.block_until_ready(ld_out)

        B = x_in.shape[0]
        y_ref, ld_ref = reference_forward(x_in, params_stored)   # f32 math, bf16-stored weights
        assert y_out.shape == (B, num_features) and ld_out.shape == (B,)
        # Identity half is a pure f32 copy -> bit exact.
        assert jnp.array_equal(y_out[:, :half], x_in[:, :half])
        # Transformed half / log-det: bf16 matmul operands + bf16 hidden, f32 accumulation.
        assert jnp.allclose(y_out, y_ref, atol=2e-1, rtol=5e-2)
        assert jnp.allclose(ld_out, ld_ref, atol=5e-1, rtol=5e-2)

    print("KERNEL_OK")
</pallas_src>

<mosaic_0001>
module attributes {stable_mosaic.version = 11 : i64} {
  func.func @_coupling_kernel(%arg0: i32, %arg1: memref<8x256xf32, #tpu.memory_space<vmem>>, %arg2: memref<128x2048xbf16, #tpu.memory_space<vmem>>, %arg3: memref<1x2048xf32, #tpu.memory_space<vmem>>, %arg4: memref<1024x128xbf16, #tpu.memory_space<vmem>>, %arg5: memref<1x128xf32, #tpu.memory_space<vmem>>, %arg6: memref<1024x128xbf16, #tpu.memory_space<vmem>>, %arg7: memref<1x128xf32, #tpu.memory_space<vmem>>, %arg8: memref<8x256xf32, #tpu.memory_space<vmem>>, %arg9: memref<1x8xf32, #tpu.memory_space<vmem>>) attributes {dimension_semantics = [#tpu.dimension_semantics<parallel>], iteration_bounds = array<i64: 1>, scalar_prefetch = 0 : i64, scratch_operands = 0 : i64, tpu.core_type = #tpu.core_type<tc>, window_params = [{transform_indices = @transform_0, window_bounds = array<i64: 8, 256>}, {pipeline_mode = #tpu.pipeline_mode<synchronous>, transform_indices = @transform_1, window_bounds = array<i64: 128, 2048>}, {pipeline_mode = #tpu.pipeline_mode<synchronous>, transform_indices = @transform_2, window_bounds = array<i64: 1, 2048>}, {pipeline_mode = #tpu.pipeline_mode<synchronous>, transform_indices = @transform_3, window_bounds = array<i64: 1024, 128>}, {pipeline_mode = #tpu.pipeline_mode<synchronous>, transform_indices = @transform_4, window_bounds = array<i64: 1, 128>}, {pipeline_mode = #tpu.pipeline_mode<synchronous>, transform_indices = @transform_5, window_bounds = array<i64: 1024, 128>}, {pipeline_mode = #tpu.pipeline_mode<synchronous>, transform_indices = @transform_6, window_bounds = array<i64: 1, 128>}, {transform_indices = @transform_7, window_bounds = array<i64: 8, 256>}, {transform_indices = @transform_8, window_bounds = array<i64: 1, 8>}]} {
    %c0 = arith.constant 0 : index
    %c0_0 = arith.constant 0 : index
    %0 = vector.load %arg1[%c0, %c0_0] : memref<8x256xf32, #tpu.memory_space<vmem>>, vector<8x128xf32>
    %c0_1 = arith.constant 0 : index
    %c128 = arith.constant 128 : index
    %1 = vector.load %arg1[%c0_1, %c128] : memref<8x256xf32, #tpu.memory_space<vmem>>, vector<8x128xf32>
    %2 = arith.truncf %0 : vector<8x128xf32> to vector<8x128xbf16>
    %c0_2 = arith.constant 0 : index
    %c0_3 = arith.constant 0 : index
    %3 = vector.load %arg2[%c0_2, %c0_3] : memref<128x2048xbf16, #tpu.memory_space<vmem>>, vector<128x2048xbf16>
    %cst = arith.constant dense<0.000000e+00> : vector<8x2048xf32>
    %4 = tpu.matmul %2, %3, %cst {dimension_numbers = #tpu.dot_dimension_numbers<[1], [0], [0], [1], [0, 0, 1, 1], [], []>} : vector<8x128xbf16>, vector<128x2048xbf16>, vector<8x2048xf32> -> vector<8x2048xf32>
    %c0_4 = arith.constant 0 : index
    %c0_5 = arith.constant 0 : index
    %5 = vector.load %arg3[%c0_4, %c0_5] : memref<1x2048xf32, #tpu.memory_space<vmem>>, vector<1x2048xf32>
    %6 = vector.broadcast %5 : vector<1x2048xf32> to vector<8x2048xf32>
    %7 = arith.addf %4, %6 : vector<8x2048xf32>
    %cst_6 = arith.constant 0.000000e+00 : f32
    %8 = vector.broadcast %cst_6 : f32 to vector<8x2048xf32>
    %9 = arith.maximumf %7, %8 : vector<8x2048xf32>
    %10 = arith.truncf %9 : vector<8x2048xf32> to vector<8x2048xbf16>
    %11 = vector.extract_strided_slice %10 {offsets = [0, 0], sizes = [8, 1024], strides = [1, 1]} : vector<8x2048xbf16> to vector<8x1024xbf16>
    %c0_7 = arith.constant 0 : index
    %c0_8 = arith.constant 0 : index
    %12 = vector.load %arg4[%c0_7, %c0_8] : memref<1024x128xbf16, #tpu.memory_space<vmem>>, vector<1024x128xbf16>
    %cst_9 = arith.constant dense<0.000000e+00> : vector<8x128xf32>
    %13 = tpu.matmul %11, %12, %cst_9 {dimension_numbers = #tpu.dot_dimension_numbers<[1], [0], [0], [1], [0, 0, 1, 1], [], []>} : vector<8x1024xbf16>, vector<1024x128xbf16>, vector<8x128xf32> -> vector<8x128xf32>
    %c0_10 = arith.constant 0 : index
    %c0_11 = arith.constant 0 : index
    %14 = vector.load %arg5[%c0_10, %c0_11] : memref<1x128xf32, #tpu.memory_space<vmem>>, vector<1x128xf32>
    %15 = vector.broadcast %14 : vector<1x128xf32> to vector<8x128xf32>
    %16 = arith.addf %13, %15 : vector<8x128xf32>
    %17 = math.tanh %16 : vector<8x128xf32>
    %18 = vector.extract_strided_slice %10 {offsets = [0, 1024], sizes = [8, 1024], strides = [1, 1]} : vector<8x2048xbf16> to vector<8x1024xbf16>
    %c0_12 = arith.constant 0 : index
    %c0_13 = arith.constant 0 : index
    %19 = vector.load %arg6[%c0_12, %c0_13] : memref<1024x128xbf16, #tpu.memory_space<vmem>>, vector<1024x128xbf16>
    %cst_14 = arith.constant dense<0.000000e+00> : vector<8x128xf32>
    %20 = tpu.matmul %18, %19, %cst_14 {dimension_numbers = #tpu.dot_dimension_numbers<[1], [0], [0], [1], [0, 0, 1, 1], [], []>} : vector<8x1024xbf16>, vector<1024x128xbf16>, vector<8x128xf32> -> vector<8x128xf32>
    %c0_15 = arith.constant 0 : index
    %c0_16 = arith.constant 0 : index
    %21 = vector.load %arg7[%c0_15, %c0_16] : memref<1x128xf32, #tpu.memory_space<vmem>>, vector<1x128xf32>
    %22 = vector.broadcast %21 : vector<1x128xf32> to vector<8x128xf32>
    %23 = arith.addf %20, %22 : vector<8x128xf32>
    %c0_17 = arith.constant 0 : index
    %c0_18 = arith.constant 0 : index
    %24 = vector.load %arg8[%c0_17, %c0_18] : memref<8x256xf32, #tpu.memory_space<vmem>>, vector<8x128xf32>
    tpu.vector_store %arg8[%c0_17, %c0_18], %0 {strides = array<i32>} : memref<8x256xf32, #tpu.memory_space<vmem>>, vector<8x128xf32>,
    %25 = math.exp %17 : vector<8x128xf32>
    %26 = arith.mulf %1, %25 : vector<8x128xf32>
    %27 = arith.addf %26, %23 : vector<8x128xf32>
    %c0_19 = arith.constant 0 : index
    %c128_20 = arith.constant 128 : index
    %28 = vector.load %arg8[%c0_19, %c128_20] : memref<8x256xf32, #tpu.memory_space<vmem>>, vector<8x128xf32>
    tpu.vector_store %arg8[%c0_19, %c128_20], %27 {strides = array<i32>} : memref<8x256xf32, #tpu.memory_space<vmem>>, vector<8x128xf32>,
    %cst_21 = arith.constant 1.000000e+00 : f32
    %29 = vector.broadcast %cst_21 : f32 to vector<1x128xf32>
    %cst_22 = arith.constant dense<0.000000e+00> : vector<1x8xf32>
    %30 = tpu.matmul %29, %17, %cst_22 {dimension_numbers = #tpu.dot_dimension_numbers<[1], [1], [0], [0], [0, 0, 1, 0], [], []>} : vector<1x128xf32>, vector<8x128xf32>, vector<1x8xf32> -> vector<1x8xf32>
    %c0_23 = arith.constant 0 : index
    %c0_24 = arith.constant 0 : index
    %31 = vector.load %arg9[%c0_23, %c0_24] : memref<1x8xf32, #tpu.memory_space<vmem>>, vector<1x8xf32>
    tpu.vector_store %arg9[%c0_23, %c0_24], %30 {strides = array<i32>} : memref<1x8xf32, #tpu.memory_space<vmem>>, vector<1x8xf32>,
    return
  }
  func.func @transform_0(%arg0: i32) -> (i32, i32) {
    %c0_i32 = arith.constant 0 : i32
    %c0_i32_0 = arith.constant 0 : i32
    return %arg0, %c0_i32 : i32, i32
  }
  func.func @transform_1(%arg0: i32) -> (i32, i32) {
    %c0_i32 = arith.constant 0 : i32
    %c0_i32_0 = arith.constant 0 : i32
    %c0_i32_1 = arith.constant 0 : i32
    return %c0_i32, %c0_i32_0 : i32, i32
  }
  func.func @transform_2(%arg0: i32) -> (i32, i32) {
    %c0_i32 = arith.constant 0 : i32
    %c0_i32_0 = arith.constant 0 : i32
    %c0_i32_1 = arith.constant 0 : i32
    return %c0_i32, %c0_i32_0 : i32, i32
  }
  func.func @transform_3(%arg0: i32) -> (i32, i32) {
    %c0_i32 = arith.constant 0 : i32
    %c0_i32_0 = arith.constant 0 : i32
    %c0_i32_1 = arith.constant 0 : i32
    return %c0_i32, %c0_i32_0 : i32, i32
  }
  func.func @transform_4(%arg0: i32) -> (i32, i32) {
    %c0_i32 = arith.constant 0 : i32
    %c0_i32_0 = arith.constant 0 : i32
    %c0_i32_1 = arith.constant 0 : i32
    return %c0_i32, %c0_i32_0 : i32, i32
  }
  func.func @transform_5(%arg0: i32) -> (i32, i32) {
    %c0_i32 = arith.constant 0 : i32
    %c0_i32_0 = arith.constant 0 : i32
    %c0_i32_1 = arith.constant 0 : i32
    return %c0_i32, %c0_i32_0 : i32, i32
  }
  func.func @transform_6(%arg0: i32) -> (i32, i32) {
    %c0_i32 = arith.constant 0 : i32
    %c0_i32_0 = arith.constant 0 : i32
    %c0_i32_1 = arith.constant 0 : i32
    return %c0_i32, %c0_i32_0 : i32, i32
  }
  func.func @transform_7(%arg0: i32) -> (i32, i32) {
    %c0_i32 = arith.constant 0 : i32
    %c0_i32_0 = arith.constant 0 : i32
    return %arg0, %c0_i32 : i32, i32
  }
  func.func @transform_8(%arg0: i32) -> (i32, i32) {
    %c0_i32 = arith.constant 0 : i32
    %c0_i32_0 = arith.constant 0 : i32
    return %c0_i32, %arg0 : i32, i32
  }
}

</mosaic_0001>

<llo_original>
// kernel: tpu_custom_call.1
$region0: #{tpu_custom_call.1}
  #allocation0 [shape = 'u32[]', space=smem, size = 0x4, offset = 0x4, fixed_abs, tag = 'smem constant byte address 0x4 - core index']
  #allocation1 [shape = 'u32[144,128]{1,0:T(1,128)}', space=vmem, size = 0x12000, scoped, tag = 'internal scratch']
  %s0 = inlined_call_operand.hbm [shape: f32[8,256], index: 0, kind: input, shape index: {}]
  %s1 = inlined_call_operand.hbm [shape: bf16[128,2048], index: 1, kind: input, shape index: {}]
  %s2 = inlined_call_operand.hbm [shape: f32[1,2048], index: 2, kind: input, shape index: {}]
  %s3 = inlined_call_operand.hbm [shape: bf16[1024,128], index: 3, kind: input, shape index: {}]
  %s4 = inlined_call_operand.vmem [shape: f32[1,128], index: 4, kind: input, shape index: {}]
  %s5 = inlined_call_operand.hbm [shape: bf16[1024,128], index: 5, kind: input, shape index: {}]
  %s6 = inlined_call_operand.vmem [shape: f32[1,128], index: 6, kind: input, shape index: {}]
  %s7 = inlined_call_operand.hbm [shape: f32[8,256], index: 7, kind: output, shape index: {0}]
  %s8 = inlined_call_operand.hbm [shape: f32[1,8], index: 8, kind: output, shape index: {1}]
  %9 = xla_tuple %s7, %s8
  %s10 = sld [smem:[#allocation0]]
  $region66: #{tpu_custom_call.1} parent=0
    _
  %s12 = ssub.s32 1, %s10
  %s13 = scalar_select 0, %s12, %s10
  $region1: #{tpu_custom_call.1} parent=0
    #allocation2 [shape = 'u8[8192]{0}', space=vmem, size = 0x2000, scoped, tag = 'input window, operand 0, single buffered']
    #allocation3 [shape = 's32[1]{0}', space=sflag, size = 0x4, scoped, tag = 'scoped memory for tpu_custom_call.1']
    #allocation4 [shape = 's32[1]{0}', space=sflag, size = 0x4, scoped, tag = 'scoped memory for tpu_custom_call.1']
    #allocation5 [shape = 'u8[524288]{0}', space=vmem, size = 0x80000, scoped, tag = 'input window, operand 1, single buffered']
    #allocation6 [shape = 's32[1]{0}', space=sflag, size = 0x4, scoped, tag = 'scoped memory for tpu_custom_call.1']
    #allocation7 [shape = 'u8[8192]{0}', space=vmem, size = 0x2000, scoped, tag = 'input window, operand 2, single buffered']
    #allocation8 [shape = 'u8[262144]{0}', space=vmem, size = 0x40000, scoped, tag = 'input window, operand 3, single buffered']
    #allocation9 [shape = 's32[1]{0}', space=sflag, size = 0x4, scoped, tag = 'scoped memory for tpu_custom_call.1']
    #allocation10 [shape = 'u8[262144]{0}', space=vmem, size = 0x40000, scoped, tag = 'input window, operand 5, single buffered']
    #allocation11 [shape = 'u8[8192]{0}', space=vmem, size = 0x2000, scoped, tag = 'output window, operand 0, single buffered']
    #allocation12 [shape = 'u8[512]{0}', space=vmem, size = 0x400, scoped, tag = 'output window, operand 1, single buffered']
    #allocation13 [shape = 's32[1]{0}', space=sflag, size = 0x4, scoped, tag = 'scoped memory for tpu_custom_call.1']
    %14 = vsyncpa [#allocation3], 0
    %15 = vsyncpa [#allocation6], 0
    %16 = vsyncpa [#allocation9], 0
    %17 = vsyncpa [#allocation4], 0
    %18 = vsyncpa [#allocation13], 0
    // Predicated region
    $region2: #{tpu_custom_call.1} parent=1 // pred_check
      _
    $region3: #{tpu_custom_call.1} parent=1 // pred_check_branch
      %20 = sbr.rel (0) target = $region5
    $region4: #{tpu_custom_call.1} parent=1 // pred_region
      %s22 = ssub.s32 256, 256
      %23 = vsyncadd [#allocation3], %s22
      %s25 = sshll.u32 [#allocation2], 4
      %s26 = int_to_ptr.vmem [resolvable:$true] %s25
      %28 = dma.hbm_to_vmem [thread:$0]  %s0, 256, %s26, [#allocation3]
    $region5: #{tpu_custom_call.1} parent=1 // pred_fallthru
      _
    // Predicated region
    $region6: #{tpu_custom_call.1} parent=1 // pred_check
      _
    $region7: #{tpu_custom_call.1} parent=1 // pred_check_branch
      %30 = sbr.rel (0) target = $region9
    $region8: #{tpu_custom_call.1} parent=1 // pred_region
      %s32 = ssub.s32 16384, 16384
      %33 = vsyncadd [#allocation6], %s32
      %s34 = sshll.u32 [#allocation5], 4
      %s35 = int_to_ptr.vmem [resolvable:$true] %s34
      %40 = dma.hbm_to_vmem [thread:$0]  %s1, 16384, %s35, [#allocation6], 1024, 1024, 64
    $region9: #{tpu_custom_call.1} parent=1 // pred_fallthru
      _
    // Predicated region
    $region10: #{tpu_custom_call.1} parent=1 // pred_check
      _
    $region11: #{tpu_custom_call.1} parent=1 // pred_check_branch
      %42 = sbr.rel (0) target = $region13
    $region12: #{tpu_custom_call.1} parent=1 // pred_region
      %s44 = ssub.s32 256, 256
      %45 = vsyncadd [#allocation6], %s44
      %s47 = sshll.u32 [#allocation7], 4
      %s48 = int_to_ptr.vmem [resolvable:$true] %s47
      %50 = dma.hbm_to_vmem [thread:$0]  %s2, 256, %s48, [#allocation6]
    $region13: #{tpu_custom_call.1} parent=1 // pred_fallthru
      _
    // Predicated region
    $region14: #{tpu_custom_call.1} parent=1 // pred_check
      _
    $region15: #{tpu_custom_call.1} parent=1 // pred_check_branch
      %52 = sbr.rel (0) target = $region17
    $region16: #{tpu_custom_call.1} parent=1 // pred_region
      %s54 = ssub.s32 8192, 8192
      %55 = vsyncadd [#allocation9], %s54
      %s56 = sshll.u32 [#allocation8], 4
      %s57 = int_to_ptr.vmem [resolvable:$true] %s56
      %62 = dma.hbm_to_vmem [thread:$0]  %s3, 8192, %s57, [#allocation9], 64, 64, 4
    $region17: #{tpu_custom_call.1} parent=1 // pred_fallthru
      _
    // Predicated region
    $region18: #{tpu_custom_call.1} parent=1 // pred_check
      _
    $region19: #{tpu_custom_call.1} parent=1 // pred_check_branch
      %64 = sbr.rel (0) target = $region21
    $region20: #{tpu_custom_call.1} parent=1 // pred_region
      _
    $region21: #{tpu_custom_call.1} parent=1 // pred_fallthru
      _
    // Predicated region
    $region22: #{tpu_custom_call.1} parent=1 // pred_check
      _
    $region23: #{tpu_custom_call.1} parent=1 // pred_check_branch
      %66 = sbr.rel (0) target = $region25
    $region24: #{tpu_custom_call.1} parent=1 // pred_region
      %s68 = ssub.s32 8192, 8192
      %69 = vsyncadd [#allocation9], %s68
      %s70 = sshll.u32 [#allocation10], 4
      %s71 = int_to_ptr.vmem [resolvable:$true] %s70
      %76 = dma.hbm_to_vmem [thread:$0]  %s5, 8192, %s71, [#allocation9], 64, 64, 4
    $region25: #{tpu_custom_call.1} parent=1 // pred_fallthru
      _
    // Predicated region
    $region26: #{tpu_custom_call.1} parent=1 // pred_check
      _
    $region27: #{tpu_custom_call.1} parent=1 // pred_check_branch
      %78 = sbr.rel (0) target = $region29
    $region28: #{tpu_custom_call.1} parent=1 // pred_region
      _
    $region29: #{tpu_custom_call.1} parent=1 // pred_fallthru
      _
    // Predicated region
    $region30: #{tpu_custom_call.1} parent=1 // pred_check
      _
    $region31: #{tpu_custom_call.1} parent=1 // pred_check_branch
      %80 = sbr.rel (0) target = $region33
    $region32: #{tpu_custom_call.1} parent=1 // pred_region
      %81 = dma.done [#allocation3], 256
    $region33: #{tpu_custom_call.1} parent=1 // pred_fallthru
      _
    // Predicated region
    $region34: #{tpu_custom_call.1} parent=1 // pred_check
      _
    $region35: #{tpu_custom_call.1} parent=1 // pred_check_branch
      %83 = sbr.rel (0) target = $region37
    $region36: #{tpu_custom_call.1} parent=1 // pred_region
      %84 = dma.done [#allocation6], 16384
    $region37: #{tpu_custom_call.1} parent=1 // pred_fallthru
      _
    // Predicated region
    $region38: #{tpu_custom_call.1} parent=1 // pred_check
      _
    $region39: #{tpu_custom_call.1} parent=1 // pred_check_branch
      %86 = sbr.rel (0) target = $region41
    $region40: #{tpu_custom_call.1} parent=1 // pred_region
      %87 = dma.done [#allocation6], 256
    $region41: #{tpu_custom_call.1} parent=1 // pred_fallthru
      _
    // Predicated region
    $region42: #{tpu_custom_call.1} parent=1 // pred_check
      _
    $region43: #{tpu_custom_call.1} parent=1 // pred_check_branch
      %89 = sbr.rel (0) target = $region45
    $region44: #{tpu_custom_call.1} parent=1 // pred_region
      %90 = dma.done [#allocation9], 8192
    $region45: #{tpu_custom_call.1} parent=1 // pred_fallthru
      _
    // Predicated region
    $region46: #{tpu_custom_call.1} parent=1 // pred_check
      _
    $region47: #{tpu_custom_call.1} parent=1 // pred_check_branch
      %92 = sbr.rel (0) target = $region49
    $region48: #{tpu_custom_call.1} parent=1 // pred_region
      %93 = dma.done [#allocation9], 8192
    $region49: #{tpu_custom_call.1} parent=1 // pred_fallthru
      _
    %v95 = vld [vmem:[#allocation2] sm:$0xff]
    %v96 = vld [vmem:[#allocation2 + $0x8] sm:$0xff]
    %v97 = vpack.c.bf16 %v95, %v95
    %v98 = vld [vmem:[#allocation5] sm:$0xff]
    %v99 = vld [vmem:[#allocation5 + $0x8] sm:$0xff]
    %v100 = vld [vmem:[#allocation5 + $0x10] sm:$0xff]
    %v101 = vld [vmem:[#allocation5 + $0x18] sm:$0xff]
    %v102 = vld [vmem:[#allocation5 + $0x20] sm:$0xff]
    %v103 = vld [vmem:[#allocation5 + $0x28] sm:$0xff]
    %v104 = vld [vmem:[#allocation5 + $0x30] sm:$0xff]
    %v105 = vld [vmem:[#allocation5 + $0x38] sm:$0xff]
    %v106 = vld [vmem:[#allocation5 + $0x40] sm:$0xff]
    %v107 = vld [vmem:[#allocation5 + $0x48] sm:$0xff]
    %v108 = vld [vmem:[#allocation5 + $0x50] sm:$0xff]
    %v109 = vld [vmem:[#allocation5 + $0x58] sm:$0xff]
    %v110 = vld [vmem:[#allocation5 + $0x60] sm:$0xff]
    %v111 = vld [vmem:[#allocation5 + $0x68] sm:$0xff]
    %v112 = vld [vmem:[#allocation5 + $0x70] sm:$0xff]
    %v113 = vld [vmem:[#allocation5 + $0x78] sm:$0xff]
    %v114 = vld [vmem:[#allocation5 + $0x80] sm:$0xff]
    %v115 = vld [vmem:[#allocation5 + $0x88] sm:$0xff]
    %v116 = vld [vmem:[#allocation5 + $0x90] sm:$0xff]
    %v117 = vld [vmem:[#allocation5 + $0x98] sm:$0xff]
    %v118 = vld [vmem:[#allocation5 + $0xa0] sm:$0xff]
    %v119 = vld [vmem:[#allocation5 + $0xa8] sm:$0xff]
    %v120 = vld [vmem:[#allocation5 + $0xb0] sm:$0xff]
    %v121 = vld [vmem:[#allocation5 + $0xb8] sm:$0xff]
    %v122 = vld [vmem:[#allocation5 + $0xc0] sm:$0xff]
    %v123 = vld [vmem:[#allocation5 + $0xc8] sm:$0xff]
    %v124 = vld [vmem:[#allocation5 + $0xd0] sm:$0xff]
    %v125 = vld [vmem:[#allocation5 + $0xd8] sm:$0xff]
    %v126 = vld [vmem:[#allocation5 + $0xe0] sm:$0xff]
    %v127 = vld [vmem:[#allocation5 + $0xe8] sm:$0xff]
    %v128 = vld [vmem:[#allocation5 + $0xf0] sm:$0xff]
    %v129 = vld [vmem:[#allocation5 + $0xf8] sm:$0xff]
    %v130 = vld [vmem:[#allocation5 + $0x100] sm:$0xff]
    %v131 = vld [vmem:[#allocation5 + $0x108] sm:$0xff]
    %v132 = vld [vmem:[#allocation5 + $0x110] sm:$0xff]
    %v133 = vld [vmem:[#allocation5 + $0x118] sm:$0xff]
    %v134 = vld [vmem:[#allocation5 + $0x120] sm:$0xff]
    %v135 = vld [vmem:[#allocation5 + $0x128] sm:$0xff]
    %v136 = vld [vmem:[#allocation5 + $0x130] sm:$0xff]
    %v137 = vld [vmem:[#allocation5 + $0x138] sm:$0xff]
    %v138 = vld [vmem:[#allocation5 + $0x140] sm:$0xff]
    %v139 = vld [vmem:[#allocation5 + $0x148] sm:$0xff]
    %v140 = vld [vmem:[#allocation5 + $0x150] sm:$0xff]
    %v141 = vld [vmem:[#allocation5 + $0x158] sm:$0xff]
    %v142 = vld [vmem:[#allocation5 + $0x160] sm:$0xff]
    %v143 = vld [vmem:[#allocation5 + $0x168] sm:$0xff]
    %v144 = vld [vmem:[#allocation5 + $0x170] sm:$0xff]
    %v145 = vld [vmem:[#allocation5 + $0x178] sm:$0xff]
    %v146 = vld [vmem:[#allocation5 + $0x180] sm:$0xff]
    %v147 = vld [vmem:[#allocation5 + $0x188] sm:$0xff]
    %v148 = vld [vmem:[#allocation5 + $0x190] sm:$0xff]
    %v149 = vld [vmem:[#allocation5 + $0x198] sm:$0xff]
    %v150 = vld [vmem:[#allocation5 + $0x1a0] sm:$0xff]
    %v151 = vld [vmem:[#allocation5 + $0x1a8] sm:$0xff]
    %v152 = vld [vmem:[#allocation5 + $0x1b0] sm:$0xff]
    %v153 = vld [vmem:[#allocation5 + $0x1b8] sm:$0xff]
    %v154 = vld [vmem:[#allocation5 + $0x1c0] sm:$0xff]
    %v155 = vld [vmem:[#allocation5 + $0x1c8] sm:$0xff]
    %v156 = vld [vmem:[#allocation5 + $0x1d0] sm:$0xff]
    %v157 = vld [vmem:[#allocation5 + $0x1d8] sm:$0xff]
    %v158 = vld [vmem:[#allocation5 + $0x1e0] sm:$0xff]
    %v159 = vld [vmem:[#allocation5 + $0x1e8] sm:$0xff]
    %v160 = vld [vmem:[#allocation5 + $0x1f0] sm:$0xff]
    %v161 = vld [vmem:[#allocation5 + $0x1f8] sm:$0xff]
    %v162 = vld [vmem:[#allocation5 + $0x200] sm:$0xff]
    %v163 = vld [vmem:[#allocation5 + $0x208] sm:$0xff]
    %v164 = vld [vmem:[#allocation5 + $0x210] sm:$0xff]
    %v165 = vld [vmem:[#allocation5 + $0x218] sm:$0xff]
    %v166 = vld [vmem:[#allocation5 + $0x220] sm:$0xff]
    %v167 = vld [vmem:[#allocation5 + $0x228] sm:$0xff]
    %v168 = vld [vmem:[#allocation5 + $0x230] sm:$0xff]
    %v169 = vld [vmem:[#allocation5 + $0x238] sm:$0xff]
    %v170 = vld [vmem:[#allocation5 + $0x240] sm:$0xff]
    %v171 = vld [vmem:[#allocation5 + $0x248] sm:$0xff]
    %v172 = vld [vmem:[#allocation5 + $0x250] sm:$0xff]
    %v173 = vld [vmem:[#allocation5 + $0x258] sm:$0xff]
    %v174 = vld [vmem:[#allocation5 + $0x260] sm:$0xff]
    %v175 = vld [vmem:[#allocation5 + $0x268] sm:$0xff]
    %v176 = vld [vmem:[#allocation5 + $0x270] sm:$0xff]
    %v177 = vld [vmem:[#allocation5 + $0x278] sm:$0xff]
    %v178 = vld [vmem:[#allocation5 + $0x280] sm:$0xff]
    %v179 = vld [vmem:[#allocation5 + $0x288] sm:$0xff]
    %v180 = vld [vmem:[#allocation5 + $0x290] sm:$0xff]
    %v181 = vld [vmem:[#allocation5 + $0x298] sm:$0xff]
    %v182 = vld [vmem:[#allocation5 + $0x2a0] sm:$0xff]
    %v183 = vld [vmem:[#allocation5 + $0x2a8] sm:$0xff]
    %v184 = vld [vmem:[#allocation5 + $0x2b0] sm:$0xff]
    %v185 = vld [vmem:[#allocation5 + $0x2b8] sm:$0xff]
    %v186 = vld [vmem:[#allocation5 + $0x2c0] sm:$0xff]
    %v187 = vld [vmem:[#allocation5 + $0x2c8] sm:$0xff]
    %v188 = vld [vmem:[#allocation5 + $0x2d0] sm:$0xff]
    %v189 = vld [vmem:[#allocation5 + $0x2d8] sm:$0xff]
    %v190 = vld [vmem:[#allocation5 + $0x2e0] sm:$0xff]
    %v191 = vld [vmem:[#allocation5 + $0x2e8] sm:$0xff]
    %v192 = vld [vmem:[#allocation5 + $0x2f0] sm:$0xff]
    %v193 = vld [vmem:[#allocation5 + $0x2f8] sm:$0xff]
    %v194 = vld [vmem:[#allocation5 + $0x300] sm:$0xff]
    %v195 = vld [vmem:[#allocation5 + $0x308] sm:$0xff]
    %v196 = vld [vmem:[#allocation5 + $0x310] sm:$0xff]
    %v197 = vld [vmem:[#allocation5 + $0x318] sm:$0xff]
    %v198 = vld [vmem:[#allocation5 + $0x320] sm:$0xff]
    %v199 = vld [vmem:[#allocation5 + $0x328] sm:$0xff]
    %v200 = vld [vmem:[#allocation5 + $0x330] sm:$0xff]
    %v201 = vld [vmem:[#allocation5 + $0x338] sm:$0xff]
    %v202 = vld [vmem:[#allocation5 + $0x340] sm:$0xff]
    %v203 = vld [vmem:[#allocation5 + $0x348] sm:$0xff]
    %v204 = vld [vmem:[#allocation5 + $0x350] sm:$0xff]
    %v205 = vld [vmem:[#allocation5 + $0x358] sm:$0xff]
    %v206 = vld [vmem:[#allocation5 + $0x360] sm:$0xff]
    %v207 = vld [vmem:[#allocation5 + $0x368] sm:$0xff]
    %v208 = vld [vmem:[#allocation5 + $0x370] sm:$0xff]
    %v209 = vld [vmem:[#allocation5 + $0x378] sm:$0xff]
    %v210 = vld [vmem:[#allocation5 + $0x380] sm:$0xff]
    %v211 = vld [vmem:[#allocation5 + $0x388] sm:$0xff]
    %v212 = vld [vmem:[#allocation5 + $0x390] sm:$0xff]
    %v213 = vld [vmem:[#allocation5 + $0x398] sm:$0xff]
    %v214 = vld [vmem:[#allocation5 + $0x3a0] sm:$0xff]
    %v215 = vld [vmem:[#allocation5 + $0x3a8] sm:$0xff]
    %v216 = vld [vmem:[#allocation5 + $0x3b0] sm:$0xff]
    %v217 = vld [vmem:[#allocation5 + $0x3b8] sm:$0xff]
    %v218 = vld [vmem:[#allocation5 + $0x3c0] sm:$0xff]
    %v219 = vld [vmem:[#allocation5 + $0x3c8] sm:$0xff]
    %v220 = vld [vmem:[#allocation5 + $0x3d0] sm:$0xff]
    %v221 = vld [vmem:[#allocation5 + $0x3d8] sm:$0xff]
    %v222 = vld [vmem:[#allocation5 + $0x3e0] sm:$0xff]
    %v223 = vld [vmem:[#allocation5 + $0x3e8] sm:$0xff]
    %v224 = vld [vmem:[#allocation5 + $0x3f0] sm:$0xff]
    %v225 = vld [vmem:[#allocation5 + $0x3f8] sm:$0xff]
    %v226 = vld [vmem:[#allocation7] sm:$0xff]
    %v227 = vld [vmem:[#allocation7 + $0x8] sm:$0xff]
    %v230 = vlaneseq
    %v231 = vshrl.u32 %v230, 7
    %v232 = vsub.s32 0, %v231
    %v233 = vrot.slane %v226, %v232
    %v234 = vlaneseq
    %v235 = vshrl.u32 %v234, 7
    %v236 = vsub.s32 1, %v235
    %v237 = vrot.slane %v226, %v236
    %v238 = vlaneseq
    %v239 = vshrl.u32 %v238, 7
    %v240 = vsub.s32 2, %v239
    %v241 = vrot.slane %v226, %v240
    %v242 = vlaneseq
    %v243 = vshrl.u32 %v242, 7
    %v244 = vsub.s32 3, %v243
    %v245 = vrot.slane %v226, %v244
    %v246 = vlaneseq
    %v247 = vshrl.u32 %v246, 7
    %v248 = vsub.s32 4, %v247
    %v249 = vrot.slane %v226, %v248
    %v250 = vlaneseq
    %v251 = vshrl.u32 %v250, 7
    %v252 = vsub.s32 5, %v251
    %v253 = vrot.slane %v226, %v252
    %v254 = vlaneseq
    %v255 = vshrl.u32 %v254, 7
    %v256 = vsub.s32 6, %v255
    %v257 = vrot.slane %v226, %v256
    %v258 = vlaneseq
    %v259 = vshrl.u32 %v258, 7
    %v260 = vsub.s32 7, %v259
    %v261 = vrot.slane %v226, %v260
    %v262 = vlaneseq
    %v263 = vshrl.u32 %v262, 7
    %v264 = vsub.s32 0, %v263
    %v265 = vrot.slane %v227, %v264
    %v266 = vlaneseq
    %v267 = vshrl.u32 %v266, 7
    %v268 = vsub.s32 1, %v267
    %v269 = vrot.slane %v227, %v268
    %v270 = vlaneseq
    %v271 = vshrl.u32 %v270, 7
    %v272 = vsub.s32 2, %v271
    %v273 = vrot.slane %v227, %v272
    %v274 = vlaneseq
    %v275 = vshrl.u32 %v274, 7
    %v276 = vsub.s32 3, %v275
    %v277 = vrot.slane %v227, %v276
    %v278 = vlaneseq
    %v279 = vshrl.u32 %v278, 7
    %v280 = vsub.s32 4, %v279
    %v281 = vrot.slane %v227, %v280
    %v282 = vlaneseq
    %v283 = vshrl.u32 %v282, 7
    %v284 = vsub.s32 5, %v283
    %v285 = vrot.slane %v227, %v284
    %v286 = vlaneseq
    %v287 = vshrl.u32 %v286, 7
    %v288 = vsub.s32 6, %v287
    %v289 = vrot.slane %v227, %v288
    %v290 = vlaneseq
    %v291 = vshrl.u32 %v290, 7
    %v292 = vsub.s32 7, %v291
    %v293 = vrot.slane %v227, %v292
    %v438 = vunpack.c.l.b16 %v98
    %v439 = vunpack.c.h.b16 %v98
    %v440 = vunpack.c.l.b16 %v99
    %v441 = vunpack.c.h.b16 %v99
    %v442 = vunpack.c.l.b16 %v100
    %v443 = vunpack.c.h.b16 %v100
    %v444 = vunpack.c.l.b16 %v101
    %v445 = vunpack.c.h.b16 %v101
    %v446 = vunpack.c.l.b16 %v102
    %v447 = vunpack.c.h.b16 %v102
    %v448 = vunpack.c.l.b16 %v103
    %v449 = vunpack.c.h.b16 %v103
    %v450 = vunpack.c.l.b16 %v104
    %v451 = vunpack.c.h.b16 %v104
    %v452 = vunpack.c.l.b16 %v105
    %v453 = vunpack.c.h.b16 %v105
    %v454 = vunpack.c.l.b16 %v106
    %v455 = vunpack.c.h.b16 %v106
    %v456 = vunpack.c.l.b16 %v107
    %v457 = vunpack.c.h.b16 %v107
    %v458 = vunpack.c.l.b16 %v108
    %v459 = vunpack.c.h.b16 %v108
    %v460 = vunpack.c.l.b16 %v109
    %v461 = vunpack.c.h.b16 %v109
    %v462 = vunpack.c.l.b16 %v110
    %v463 = vunpack.c.h.b16 %v110
    %v464 = vunpack.c.l.b16 %v111
    %v465 = vunpack.c.h.b16 %v111
    %v466 = vunpack.c.l.b16 %v112
    %v467 = vunpack.c.h.b16 %v112
    %v468 = vunpack.c.l.b16 %v113
    %v469 = vunpack.c.h.b16 %v113
    %v470 = vunpack.c.l.b16 %v114
    %v471 = vunpack.c.h.b16 %v114
    %v472 = vunpack.c.l.b16 %v115
    %v473 = vunpack.c.h.b16 %v115
    %v474 = vunpack.c.l.b16 %v116
    %v475 = vunpack.c.h.b16 %v116
    %v476 = vunpack.c.l.b16 %v117
    %v477 = vunpack.c.h.b16 %v117
    %v478 = vunpack.c.l.b16 %v118
    %v479 = vunpack.c.h.b16 %v118
    %v480 = vunpack.c.l.b16 %v119
    %v481 = vunpack.c.h.b16 %v119
    %v482 = vunpack.c.l.b16 %v120
    %v483 = vunpack.c.h.b16 %v120
    %v484 = vunpack.c.l.b16 %v121
    %v485 = vunpack.c.h.b16 %v121
    %v486 = vunpack.c.l.b16 %v122
    %v487 = vunpack.c.h.b16 %v122
    %v488 = vunpack.c.l.b16 %v123
    %v489 = vunpack.c.h.b16 %v123
    %v490 = vunpack.c.l.b16 %v124
    %v491 = vunpack.c.h.b16 %v124
    %v492 = vunpack.c.l.b16 %v125
    %v493 = vunpack.c.h.b16 %v125
    %v494 = vunpack.c.l.b16 %v126
    %v495 = vunpack.c.h.b16 %v126
    %v496 = vunpack.c.l.b16 %v127
    %v497 = vunpack.c.h.b16 %v127
    %v498 = vunpack.c.l.b16 %v128
    %v499 = vunpack.c.h.b16 %v128
    %v500 = vunpack.c.l.b16 %v129
    %v501 = vunpack.c.h.b16 %v129
    %v502 = vunpack.c.l.b16 %v130
    %v503 = vunpack.c.h.b16 %v130
    %v504 = vunpack.c.l.b16 %v131
    %v505 = vunpack.c.h.b16 %v131
    %v506 = vunpack.c.l.b16 %v132
    %v507 = vunpack.c.h.b16 %v132
    %v508 = vunpack.c.l.b16 %v133
    %v509 = vunpack.c.h.b16 %v133
    %v510 = vunpack.c.l.b16 %v134
    %v511 = vunpack.c.h.b16 %v134
    %v512 = vunpack.c.l.b16 %v135
    %v513 = vunpack.c.h.b16 %v135
    %v514 = vunpack.c.l.b16 %v136
    %v515 = vunpack.c.h.b16 %v136
    %v516 = vunpack.c.l.b16 %v137
    %v517 = vunpack.c.h.b16 %v137
    %v518 = vunpack.c.l.b16 %v138
    %v519 = vunpack.c.h.b16 %v138
    %v520 = vunpack.c.l.b16 %v139
    %v521 = vunpack.c.h.b16 %v139
    %v522 = vunpack.c.l.b16 %v140
    %v523 = vunpack.c.h.b16 %v140
    %v524 = vunpack.c.l.b16 %v141
    %v525 = vunpack.c.h.b16 %v141
    %v526 = vunpack.c.l.b16 %v142
    %v527 = vunpack.c.h.b16 %v142
    %v528 = vunpack.c.l.b16 %v143
    %v529 = vunpack.c.h.b16 %v143
    %v530 = vunpack.c.l.b16 %v144
    %v531 = vunpack.c.h.b16 %v144
    %v532 = vunpack.c.l.b16 %v145
    %v533 = vunpack.c.h.b16 %v145
    %v534 = vunpack.c.l.b16 %v146
    %v535 = vunpack.c.h.b16 %v146
    %v536 = vunpack.c.l.b16 %v147
    %v537 = vunpack.c.h.b16 %v147
    %v538 = vunpack.c.l.b16 %v148
    %v539 = vunpack.c.h.b16 %v148
    %v540 = vunpack.c.l.b16 %v149
    %v541 = vunpack.c.h.b16 %v149
    %v542 = vunpack.c.l.b16 %v150
    %v543 = vunpack.c.h.b16 %v150
    %v544 = vunpack.c.l.b16 %v151
    %v545 = vunpack.c.h.b16 %v151
    %v546 = vunpack.c.l.b16 %v152
    %v547 = vunpack.c.h.b16 %v152
    %v548 = vunpack.c.l.b16 %v153
    %v549 = vunpack.c.h.b16 %v153
    %v550 = vunpack.c.l.b16 %v154
    %v551 = vunpack.c.h.b16 %v154
    %v552 = vunpack.c.l.b16 %v155
    %v553 = vunpack.c.h.b16 %v155
    %v554 = vunpack.c.l.b16 %v156
    %v555 = vunpack.c.h.b16 %v156
    %v556 = vunpack.c.l.b16 %v157
    %v557 = vunpack.c.h.b16 %v157
    %v558 = vunpack.c.l.b16 %v158
    %v559 = vunpack.c.h.b16 %v158
    %v560 = vunpack.c.l.b16 %v159
    %v561 = vunpack.c.h.b16 %v159
    %v562 = vunpack.c.l.b16 %v160
    %v563 = vunpack.c.h.b16 %v160
    %v564 = vunpack.c.l.b16 %v161
    %v565 = vunpack.c.h.b16 %v161
    %v566 = vunpack.c.l.b16 %v162
    %v567 = vunpack.c.h.b16 %v162
    %v568 = vunpack.c.l.b16 %v163
    %v569 = vunpack.c.h.b16 %v163
    %v570 = vunpack.c.l.b16 %v164
    %v571 = vunpack.c.h.b16 %v164
    %v572 = vunpack.c.l.b16 %v165
    %v573 = vunpack.c.h.b16 %v165
    %v574 = vunpack.c.l.b16 %v166
    %v575 = vunpack.c.h.b16 %v166
    %v576 = vunpack.c.l.b16 %v167
    %v577 = vunpack.c.h.b16 %v167
    %v578 = vunpack.c.l.b16 %v168
    %v579 = vunpack.c.h.b16 %v168
    %v580 = vunpack.c.l.b16 %v169
    %v581 = vunpack.c.h.b16 %v169
    %v582 = vunpack.c.l.b16 %v170
    %v583 = vunpack.c.h.b16 %v170
    %v584 = vunpack.c.l.b16 %v171
    %v585 = vunpack.c.h.b16 %v171
    %v586 = vunpack.c.l.b16 %v172
    %v587 = vunpack.c.h.b16 %v172
    %v588 = vunpack.c.l.b16 %v173
    %v589 = vunpack.c.h.b16 %v173
    %v590 = vunpack.c.l.b16 %v174
    %v591 = vunpack.c.h.b16 %v174
    %v592 = vunpack.c.l.b16 %v175
    %v593 = vunpack.c.h.b16 %v175
    %v594 = vunpack.c.l.b16 %v176
    %v595 = vunpack.c.h.b16 %v176
    %v596 = vunpack.c.l.b16 %v177
    %v597 = vunpack.c.h.b16 %v177
    %v598 = vunpack.c.l.b16 %v178
    %v599 = vunpack.c.h.b16 %v178
    %v600 = vunpack.c.l.b16 %v179
    %v601 = vunpack.c.h.b16 %v179
    %v602 = vunpack.c.l.b16 %v180
    %v603 = vunpack.c.h.b16 %v180
    %v604 = vunpack.c.l.b16 %v181
    %v605 = vunpack.c.h.b16 %v181
    %v606 = vunpack.c.l.b16 %v182
    %v607 = vunpack.c.h.b16 %v182
    %v608 = vunpack.c.l.b16 %v183
    %v609 = vunpack.c.h.b16 %v183
    %v610 = vunpack.c.l.b16 %v184
    %v611 = vunpack.c.h.b16 %v184
    %v612 = vunpack.c.l.b16 %v185
    %v613 = vunpack.c.h.b16 %v185
    %v614 = vunpack.c.l.b16 %v186
    %v615 = vunpack.c.h.b16 %v186
    %v616 = vunpack.c.l.b16 %v187
    %v617 = vunpack.c.h.b16 %v187
    %v618 = vunpack.c.l.b16 %v188
    %v619 = vunpack.c.h.b16 %v188
    %v620 = vunpack.c.l.b16 %v189
    %v621 = vunpack.c.h.b16 %v189
    %v622 = vunpack.c.l.b16 %v190
    %v623 = vunpack.c.h.b16 %v190
    %v624 = vunpack.c.l.b16 %v191
    %v625 = vunpack.c.h.b16 %v191
    %v626 = vunpack.c.l.b16 %v192
    %v627 = vunpack.c.h.b16 %v192
    %v628 = vunpack.c.l.b16 %v193
    %v629 = vunpack.c.h.b16 %v193
    %v630 = vunpack.c.l.b16 %v194
    %v631 = vunpack.c.h.b16 %v194
    %v632 = vunpack.c.l.b16 %v195
    %v633 = vunpack.c.h.b16 %v195
    %v634 = vunpack.c.l.b16 %v196
    %v635 = vunpack.c.h.b16 %v196
    %v636 = vunpack.c.l.b16 %v197
    %v637 = vunpack.c.h.b16 %v197
    %v638 = vunpack.c.l.b16 %v198
    %v639 = vunpack.c.h.b16 %v198
    %v640 = vunpack.c.l.b16 %v199
    %v641 = vunpack.c.h.b16 %v199
    %v642 = vunpack.c.l.b16 %v200
    %v643 = vunpack.c.h.b16 %v200
    %v644 = vunpack.c.l.b16 %v201
    %v645 = vunpack.c.h.b16 %v201
    %v646 = vunpack.c.l.b16 %v202
    %v647 = vunpack.c.h.b16 %v202
    %v648 = vunpack.c.l.b16 %v203
    %v649 = vunpack.c.h.b16 %v203
    %v650 = vunpack.c.l.b16 %v204
    %v651 = vunpack.c.h.b16 %v204
    %v652 = vunpack.c.l.b16 %v205
    %v653 = vunpack.c.h.b16 %v205
    %v654 = vunpack.c.l.b16 %v206
    %v655 = vunpack.c.h.b16 %v206
    %v656 = vunpack.c.l.b16 %v207
    %v657 = vunpack.c.h.b16 %v207
    %v658 = vunpack.c.l.b16 %v208
    %v659 = vunpack.c.h.b16 %v208
    %v660 = vunpack.c.l.b16 %v209
    %v661 = vunpack.c.h.b16 %v209
    %v662 = vunpack.c.l.b16 %v210
    %v663 = vunpack.c.h.b16 %v210
    %v664 = vunpack.c.l.b16 %v211
    %v665 = vunpack.c.h.b16 %v211
    %v666 = vunpack.c.l.b16 %v212
    %v667 = vunpack.c.h.b16 %v212
    %v668 = vunpack.c.l.b16 %v213
    %v669 = vunpack.c.h.b16 %v213
    %v670 = vunpack.c.l.b16 %v214
    %v671 = vunpack.c.h.b16 %v214
    %v672 = vunpack.c.l.b16 %v215
    %v673 = vunpack.c.h.b16 %v215
    %v674 = vunpack.c.l.b16 %v216
    %v675 = vunpack.c.h.b16 %v216
    %v676 = vunpack.c.l.b16 %v217
    %v677 = vunpack.c.h.b16 %v217
    %v678 = vunpack.c.l.b16 %v218
    %v679 = vunpack.c.h.b16 %v218
    %v680 = vunpack.c.l.b16 %v219
    %v681 = vunpack.c.h.b16 %v219
    %v682 = vunpack.c.l.b16 %v220
    %v683 = vunpack.c.h.b16 %v220
    %v684 = vunpack.c.l.b16 %v221
    %v685 = vunpack.c.h.b16 %v221
    %v686 = vunpack.c.l.b16 %v222
    %v687 = vunpack.c.h.b16 %v222
    %v688 = vunpack.c.l.b16 %v223
    %v689 = vunpack.c.h.b16 %v223
    %v690 = vunpack.c.l.b16 %v224
    %v691 = vunpack.c.h.b16 %v224
    %v692 = vunpack.c.l.b16 %v225
    %v693 = vunpack.c.h.b16 %v225
    %v694 = vpack.c.b16 %v454, %v438
    %v695 = vpack.c.b16 %v455, %v439
    %v696 = vpack.c.b16 %v456, %v440
    %v697 = vpack.c.b16 %v457, %v441
    %v698 = vpack.c.b16 %v458, %v442
    %v699 = vpack.c.b16 %v459, %v443
    %v700 = vpack.c.b16 %v460, %v444
    %v701 = vpack.c.b16 %v461, %v445
    %v702 = vpack.c.b16 %v462, %v446
    %v703 = vpack.c.b16 %v463, %v447
    %v704 = vpack.c.b16 %v464, %v448
    %v705 = vpack.c.b16 %v465, %v449
    %v706 = vpack.c.b16 %v466, %v450
    %v707 = vpack.c.b16 %v467, %v451
    %v708 = vpack.c.b16 %v468, %v452
    %v709 = vpack.c.b16 %v469, %v453
    %v710 = vpack.c.b16 %v486, %v470
    %v711 = vpack.c.b16 %v487, %v471
    %v712 = vpack.c.b16 %v488, %v472
    %v713 = vpack.c.b16 %v489, %v473
    %v714 = vpack.c.b16 %v490, %v474
    %v715 = vpack.c.b16 %v491, %v475
    %v716 = vpack.c.b16 %v492, %v476
    %v717 = vpack.c.b16 %v493, %v477
    %v718 = vpack.c.b16 %v494, %v478
    %v719 = vpack.c.b16 %v495, %v479
    %v720 = vpack.c.b16 %v496, %v480
    %v721 = vpack.c.b16 %v497, %v481
    %v722 = vpack.c.b16 %v498, %v482
    %v723 = vpack.c.b16 %v499, %v483
    %v724 = vpack.c.b16 %v500, %v484
    %v725 = vpack.c.b16 %v501, %v485
    %v726 = vpack.c.b16 %v518, %v502
    %v727 = vpack.c.b16 %v519, %v503
    %v728 = vpack.c.b16 %v520, %v504
    %v729 = vpack.c.b16 %v521, %v505
    %v730 = vpack.c.b16 %v522, %v506
    %v731 = vpack.c.b16 %v523, %v507
    %v732 = vpack.c.b16 %v524, %v508
    %v733 = vpack.c.b16 %v525, %v509
    %v734 = vpack.c.b16 %v526, %v510
    %v735 = vpack.c.b16 %v527, %v511
    %v736 = vpack.c.b16 %v528, %v512
    %v737 = vpack.c.b16 %v529, %v513
    %v738 = vpack.c.b16 %v530, %v514
    %v739 = vpack.c.b16 %v531, %v515
    %v740 = vpack.c.b16 %v532, %v516
    %v741 = vpack.c.b16 %v533, %v517
    %v742 = vpack.c.b16 %v550, %v534
    %v743 = vpack.c.b16 %v551, %v535
    %v744 = vpack.c.b16 %v552, %v536
    %v745 = vpack.c.b16 %v553, %v537
    %v746 = vpack.c.b16 %v554, %v538
    %v747 = vpack.c.b16 %v555, %v539
    %v748 = vpack.c.b16 %v556, %v540
    %v749 = vpack.c.b16 %v557, %v541
    %v750 = vpack.c.b16 %v558, %v542
    %v751 = vpack.c.b16 %v559, %v543
    %v752 = vpack.c.b16 %v560, %v544
    %v753 = vpack.c.b16 %v561, %v545
    %v754 = vpack.c.b16 %v562, %v546
    %v755 = vpack.c.b16 %v563, %v547
    %v756 = vpack.c.b16 %v564, %v548
    %v757 = vpack.c.b16 %v565, %v549
    %v758 = vpack.c.b16 %v582, %v566
    %v759 = vpack.c.b16 %v583, %v567
    %v760 = vpack.c.b16 %v584, %v568
    %v761 = vpack.c.b16 %v585, %v569
    %v762 = vpack.c.b16 %v586, %v570
    %v763 = vpack.c.b16 %v587, %v571
    %v764 = vpack.c.b16 %v588, %v572
    %v765 = vpack.c.b16 %v589, %v573
    %v766 = vpack.c.b16 %v590, %v574
    %v767 = vpack.c.b16 %v591, %v575
    %v768 = vpack.c.b16 %v592, %v576
    %v769 = vpack.c.b16 %v593, %v577
    %v770 = vpack.c.b16 %v594, %v578
    %v771 = vpack.c.b16 %v595, %v579
    %v772 = vpack.c.b16 %v596, %v580
    %v773 = vpack.c.b16 %v597, %v581
    %v774 = vpack.c.b16 %v614, %v598
    %v775 = vpack.c.b16 %v615, %v599
    %v776 = vpack.c.b16 %v616, %v600
    %v777 = vpack.c.b16 %v617, %v601
    %v778 = vpack.c.b16 %v618, %v602
    %v779 = vpack.c.b16 %v619, %v603
    %v780 = vpack.c.b16 %v620, %v604
    %v781 = vpack.c.b16 %v621, %v605
    %v782 = vpack.c.b16 %v622, %v606
    %v783 = vpack.c.b16 %v623, %v607
    %v784 = vpack.c.b16 %v624, %v608
    %v785 = vpack.c.b16 %v625, %v609
    %v786 = vpack.c.b16 %v626, %v610
    %v787 = vpack.c.b16 %v627, %v611
    %v788 = vpack.c.b16 %v628, %v612
    %v789 = vpack.c.b16 %v629, %v613
    %v790 = vpack.c.b16 %v646, %v630
    %v791 = vpack.c.b16 %v647, %v631
    %v792 = vpack.c.b16 %v648, %v632
    %v793 = vpack.c.b16 %v649, %v633
    %v794 = vpack.c.b16 %v650, %v634
    %v795 = vpack.c.b16 %v651, %v635
    %v796 = vpack.c.b16 %v652, %v636
    %v797 = vpack.c.b16 %v653, %v637
    %v798 = vpack.c.b16 %v654, %v638
    %v799 = vpack.c.b16 %v655, %v639
    %v800 = vpack.c.b16 %v656, %v640
    %v801 = vpack.c.b16 %v657, %v641
    %v802 = vpack.c.b16 %v658, %v642
    %v803 = vpack.c.b16 %v659, %v643
    %v804 = vpack.c.b16 %v660, %v644
    %v805 = vpack.c.b16 %v661, %v645
    %v806 = vpack.c.b16 %v678, %v662
    %v807 = vpack.c.b16 %v679, %v663
    %v808 = vpack.c.b16 %v680, %v664
    %v809 = vpack.c.b16 %v681, %v665
    %v810 = vpack.c.b16 %v682, %v666
    %v811 = vpack.c.b16 %v683, %v667
    %v812 = vpack.c.b16 %v684, %v668
    %v813 = vpack.c.b16 %v685, %v669
    %v814 = vpack.c.b16 %v686, %v670
    %v815 = vpack.c.b16 %v687, %v671
    %v816 = vpack.c.b16 %v688, %v672
    %v817 = vpack.c.b16 %v689, %v673
    %v818 = vpack.c.b16 %v690, %v674
    %v819 = vpack.c.b16 %v691, %v675
    %v820 = vpack.c.b16 %v692, %v676
    %v821 = vpack.c.b16 %v693, %v677
    %950 = vmatprep.subr.bf16.mxu0 %v695
    %951 = vmatpush1.bf16.msra.mxu0 %v694
    %952 = vmatprep.subr.bf16.mxu0 %v711
    %953 = vmatpush1.bf16.msra.mxu0 %v710
    %954 = vmatprep.subr.bf16.mxu0 %v727
    %955 = vmatpush1.bf16.msra.mxu0 %v726
    %956 = vmatprep.subr.bf16.mxu0 %v743
    %957 = vmatpush1.bf16.msra.mxu0 %v742
    %958 = vmatprep.subr.bf16.mxu0 %v759
    %959 = vmatpush1.bf16.msra.mxu0 %v758
    %960 = vmatprep.subr.bf16.mxu0 %v775
    %961 = vmatpush1.bf16.msra.mxu0 %v774
    %962 = vmatprep.subr.bf16.mxu0 %v791
    %963 = vmatpush1.bf16.msra.mxu0 %v790
    %964 = vmatprep.subr.bf16.mxu0 %v807
    %965 = vmatpush1.bf16.msra.mxu0 %v806
    %966 = vmatprep.subr.bf16.mxu0 0
    %967 = vmatpush1.bf16.msra.mxu0 0
    %968 = vmatprep.subr.bf16.mxu0 0
    %969 = vmatpush1.bf16.msra.mxu0 0
    %970 = vmatprep.subr.bf16.mxu0 0
    %971 = vmatpush1.bf16.msra.mxu0 0
    %972 = vmatprep.subr.bf16.mxu0 0
    %973 = vmatpush1.bf16.msra.mxu0 0
    %974 = vmatprep.subr.bf16.mxu0 0
    %975 = vmatpush1.bf16.msra.mxu0 0
    %976 = vmatprep.subr.bf16.mxu0 0
    %977 = vmatpush1.bf16.msra.mxu0 0
    %978 = vmatprep.subr.bf16.mxu0 0
    %979 = vmatpush1.bf16.msra.mxu0 0
    %980 = vmatprep.subr.bf16.mxu0 0
    %981 = vmatpush1.bf16.msra.mxu0 0
    %982 = vmatprep.mubr.bf16.mxu0 0
    %983 = vmatmul.mubr.bf16.gmra.mrb[0].mxu0 %v97
    %v984 = vpop.f32.mrb[0].mxu0
    %v985 = vadd.f32 %v233, %v984
    %v986 = vpop.f32.mrb[0].mxu0
    %v987 = vadd.f32 %v237, %v986
    %v988 = vpop.f32.mrb[0].mxu0
    %v989 = vpop.f32.mrb[0].mxu0
    %990 = vdwg.mxu0
    %991 = vmatprep.subr.bf16.mxu0 %v697
    %992 = vmatpush1.bf16.msra.mxu0 %v696
    %993 = vmatprep.subr.bf16.mxu0 %v713
    %994 = vmatpush1.bf16.msra.mxu0 %v712
    %995 = vmatprep.subr.bf16.mxu0 %v729
    %996 = vmatpush1.bf16.msra.mxu0 %v728
    %997 = vmatprep.subr.bf16.mxu0 %v745
    %998 = vmatpush1.bf16.msra.mxu0 %v744
    %999 = vmatprep.subr.bf16.mxu0 %v761
    %1000 = vmatpush1.bf16.msra.mxu0 %v760
    %1001 = vmatprep.subr.bf16.mxu0 %v777
    %1002 = vmatpush1.bf16.msra.mxu0 %v776
    %1003 = vmatprep.subr.bf16.mxu0 %v793
    %1004 = vmatpush1.bf16.msra.mxu0 %v792
    %1005 = vmatprep.subr.bf16.mxu0 %v809
    %1006 = vmatpush1.bf16.msra.mxu0 %v808
    %1007 = vmatprep.subr.bf16.mxu0 0
    %1008 = vmatpush1.bf16.msra.mxu0 0
    %1009 = vmatprep.subr.bf16.mxu0 0
    %1010 = vmatpush1.bf16.msra.mxu0 0
    %1011 = vmatprep.subr.bf16.mxu0 0
    %1012 = vmatpush1.bf16.msra.mxu0 0
    %1013 = vmatprep.subr.bf16.mxu0 0
    %1014 = vmatpush1.bf16.msra.mxu0 0
    %1015 = vmatprep.subr.bf16.mxu0 0
    %1016 = vmatpush1.bf16.msra.mxu0 0
    %1017 = vmatprep.subr.bf16.mxu0 0
    %1018 = vmatpush1.bf16.msra.mxu0 0
    %1019 = vmatprep.subr.bf16.mxu0 0
    %1020 = vmatpush1.bf16.msra.mxu0 0
    %1021 = vmatprep.subr.bf16.mxu0 0
    %1022 = vmatpush1.bf16.msra.mxu0 0
    %1023 = vmatprep.mubr.bf16.mxu0 0
    %1024 = vmatmul.mubr.bf16.gmra.mrb[0].mxu0 %v97
    %v1025 = vpop.f32.mrb[0].mxu0
    %v1026 = vadd.f32 %v241, %v1025
    %v1027 = vpop.f32.mrb[0].mxu0
    %v1028 = vadd.f32 %v245, %v1027
    %v1029 = vpop.f32.mrb[0].mxu0
    %v1030 = vpop.f32.mrb[0].mxu0
    %1031 = vdwg.mxu0
    %1032 = vmatprep.subr.bf16.mxu0 %v699
    %1033 = vmatpush1.bf16.msra.mxu0 %v698
    %1034 = vmatprep.subr.bf16.mxu0 %v715
    %1035 = vmatpush1.bf16.msra.mxu0 %v714
    %1036 = vmatprep.subr.bf16.mxu0 %v731
    %1037 = vmatpush1.bf16.msra.mxu0 %v730
    %1038 = vmatprep.subr.bf16.mxu0 %v747
    %1039 = vmatpush1.bf16.msra.mxu0 %v746
    %1040 = vmatprep.subr.bf16.mxu0 %v763
    %1041 = vmatpush1.bf16.msra.mxu0 %v762
    %1042 = vmatprep.subr.bf16.mxu0 %v779
    %1043 = vmatpush1.bf16.msra.mxu0 %v778
    %1044 = vmatprep.subr.bf16.mxu0 %v795
    %1045 = vmatpush1.bf16.msra.mxu0 %v794
    %1046 = vmatprep.subr.bf16.mxu0 %v811
    %1047 = vmatpush1.bf16.msra.mxu0 %v810
    %1048 = vmatprep.subr.bf16.mxu0 0
    %1049 = vmatpush1.bf16.msra.mxu0 0
    %1050 = vmatprep.subr.bf16.mxu0 0
    %1051 = vmatpush1.bf16.msra.mxu0 0
    %1052 = vmatprep.subr.bf16.mxu0 0
    %1053 = vmatpush1.bf16.msra.mxu0 0
    %1054 = vmatprep.subr.bf16.mxu0 0
    %1055 = vmatpush1.bf16.msra.mxu0 0
    %1056 = vmatprep.subr.bf16.mxu0 0
    %1057 = vmatpush1.bf16.msra.mxu0 0
    %1058 = vmatprep.subr.bf16.mxu0 0
    %1059 = vmatpush1.bf16.msra.mxu0 0
    %1060 = vmatprep.subr.bf16.mxu0 0
    %1061 = vmatpush1.bf16.msra.mxu0 0
    %1062 = vmatprep.subr.bf16.mxu0 0
    %1063 = vmatpush1.bf16.msra.mxu0 0
    %1064 = vmatprep.mubr.bf16.mxu0 0
    %1065 = vmatmul.mubr.bf16.gmra.mrb[0].mxu0 %v97
    %v1066 = vpop.f32.mrb[0].mxu0
    %v1067 = vadd.f32 %v249, %v1066
    %v1068 = vpop.f32.mrb[0].mxu0
    %v1069 = vadd.f32 %v253, %v1068
    %v1070 = vpop.f32.mrb[0].mxu0
    %v1071 = vpop.f32.mrb[0].mxu0
    %1072 = vdwg.mxu0
    %1073 = vmatprep.subr.bf16.mxu0 %v701
    %1074 = vmatpush1.bf16.msra.mxu0 %v700
    %1075 = vmatprep.subr.bf16.mxu0 %v717
    %1076 = vmatpush1.bf16.msra.mxu0 %v716
    %1077 = vmatprep.subr.bf16.mxu0 %v733
    %1078 = vmatpush1.bf16.msra.mxu0 %v732
    %1079 = vmatprep.subr.bf16.mxu0 %v749
    %1080 = vmatpush1.bf16.msra.mxu0 %v748
    %1081 = vmatprep.subr.bf16.mxu0 %v765
    %1082 = vmatpush1.bf16.msra.mxu0 %v764
    %1083 = vmatprep.subr.bf16.mxu0 %v781
    %1084 = vmatpush1.bf16.msra.mxu0 %v780
    %1085 = vmatprep.subr.bf16.mxu0 %v797
    %1086 = vmatpush1.bf16.msra.mxu0 %v796
    %1087 = vmatprep.subr.bf16.mxu0 %v813
    %1088 = vmatpush1.bf16.msra.mxu0 %v812
    %1089 = vmatprep.subr.bf16.mxu0 0
    %1090 = vmatpush1.bf16.msra.mxu0 0
    %1091 = vmatprep.subr.bf16.mxu0 0
    %1092 = vmatpush1.bf16.msra.mxu0 0
    %1093 = vmatprep.subr.bf16.mxu0 0
    %1094 = vmatpush1.bf16.msra.mxu0 0
    %1095 = vmatprep.subr.bf16.mxu0 0
    %1096 = vmatpush1.bf16.msra.mxu0 0
    %1097 = vmatprep.subr.bf16.mxu0 0
    %1098 = vmatpush1.bf16.msra.mxu0 0
    %1099 = vmatprep.subr.bf16.mxu0 0
    %1100 = vmatpush1.bf16.msra.mxu0 0
    %1101 = vmatprep.subr.bf16.mxu0 0
    %1102 = vmatpush1.bf16.msra.mxu0 0
    %1103 = vmatprep.subr.bf16.mxu0 0
    %1104 = vmatpush1.bf16.msra.mxu0 0
    %1105 = vmatprep.mubr.bf16.mxu0 0
    %1106 = vmatmul.mubr.bf16.gmra.mrb[0].mxu0 %v97
    %v1107 = vpop.f32.mrb[0].mxu0
    %v1108 = vadd.f32 %v257, %v1107
    %v1109 = vpop.f32.mrb[0].mxu0
    %v1110 = vadd.f32 %v261, %v1109
    %v1111 = vpop.f32.mrb[0].mxu0
    %v1112 = vpop.f32.mrb[0].mxu0
    %1113 = vdwg.mxu0
    %1114 = vmatprep.subr.bf16.mxu0 %v703
    %1115 = vmatpush1.bf16.msra.mxu0 %v702
    %1116 = vmatprep.subr.bf16.mxu0 %v719
    %1117 = vmatpush1.bf16.msra.mxu0 %v718
    %1118 = vmatprep.subr.bf16.mxu0 %v735
    %1119 = vmatpush1.bf16.msra.mxu0 %v734
    %1120 = vmatprep.subr.bf16.mxu0 %v751
    %1121 = vmatpush1.bf16.msra.mxu0 %v750
    %1122 = vmatprep.subr.bf16.mxu0 %v767
    %1123 = vmatpush1.bf16.msra.mxu0 %v766
    %1124 = vmatprep.subr.bf16.mxu0 %v783
    %1125 = vmatpush1.bf16.msra.mxu0 %v782
    %1126 = vmatprep.subr.bf16.mxu0 %v799
    %1127 = vmatpush1.bf16.msra.mxu0 %v798
    %1128 = vmatprep.subr.bf16.mxu0 %v815
    %1129 = vmatpush1.bf16.msra.mxu0 %v814
    %1130 = vmatprep.subr.bf16.mxu0 0
    %1131 = vmatpush1.bf16.msra.mxu0 0
    %1132 = vmatprep.subr.bf16.mxu0 0
    %1133 = vmatpush1.bf16.msra.mxu0 0
    %1134 = vmatprep.subr.bf16.mxu0 0
    %1135 = vmatpush1.bf16.msra.mxu0 0
    %1136 = vmatprep.subr.bf16.mxu0 0
    %1137 = vmatpush1.bf16.msra.mxu0 0
    %1138 = vmatprep.subr.bf16.mxu0 0
    %1139 = vmatpush1.bf16.msra.mxu0 0
    %1140 = vmatprep.subr.bf16.mxu0 0
    %1141 = vmatpush1.bf16.msra.mxu0 0
    %1142 = vmatprep.subr.bf16.mxu0 0
    %1143 = vmatpush1.bf16.msra.mxu0 0
    %1144 = vmatprep.subr.bf16.mxu0 0
    %1145 = vmatpush1.bf16.msra.mxu0 0
    %1146 = vmatprep.mubr.bf16.mxu0 0
    %1147 = vmatmul.mubr.bf16.gmra.mrb[0].mxu0 %v97
    %v1148 = vpop.f32.mrb[0].mxu0
    %v1149 = vadd.f32 %v265, %v1148
    %v1150 = vpop.f32.mrb[0].mxu0
    %v1151 = vadd.f32 %v269, %v1150
    %v1152 = vpop.f32.mrb[0].mxu0
    %v1153 = vpop.f32.mrb[0].mxu0
    %1154 = vdwg.mxu0
    %1155 = vmatprep.subr.bf16.mxu0 %v705
    %1156 = vmatpush1.bf16.msra.mxu0 %v704
    %1157 = vmatprep.subr.bf16.mxu0 %v721
    %1158 = vmatpush1.bf16.msra.mxu0 %v720
    %1159 = vmatprep.subr.bf16.mxu0 %v737
    %1160 = vmatpush1.bf16.msra.mxu0 %v736
    %1161 = vmatprep.subr.bf16.mxu0 %v753
    %1162 = vmatpush1.bf16.msra.mxu0 %v752
    %1163 = vmatprep.subr.bf16.mxu0 %v769
    %1164 = vmatpush1.bf16.msra.mxu0 %v768
    %1165 = vmatprep.subr.bf16.mxu0 %v785
    %1166 = vmatpush1.bf16.msra.mxu0 %v784
    %1167 = vmatprep.subr.bf16.mxu0 %v801
    %1168 = vmatpush1.bf16.msra.mxu0 %v800
    %1169 = vmatprep.subr.bf16.mxu0 %v817
    %1170 = vmatpush1.bf16.msra.mxu0 %v816
    %1171 = vmatprep.subr.bf16.mxu0 0
    %1172 = vmatpush1.bf16.msra.mxu0 0
    %1173 = vmatprep.subr.bf16.mxu0 0
    %1174 = vmatpush1.bf16.msra.mxu0 0
    %1175 = vmatprep.subr.bf16.mxu0 0
    %1176 = vmatpush1.bf16.msra.mxu0 0
    %1177 = vmatprep.subr.bf16.mxu0 0
    %1178 = vmatpush1.bf16.msra.mxu0 0
    %1179 = vmatprep.subr.bf16.mxu0 0
    %1180 = vmatpush1.bf16.msra.mxu0 0
    %1181 = vmatprep.subr.bf16.mxu0 0
    %1182 = vmatpush1.bf16.msra.mxu0 0
    %1183 = vmatprep.subr.bf16.mxu0 0
    %1184 = vmatpush1.bf16.msra.mxu0 0
    %1185 = vmatprep.subr.bf16.mxu0 0
    %1186 = vmatpush1.bf16.msra.mxu0 0
    %1187 = vmatprep.mubr.bf16.mxu0 0
    %1188 = vmatmul.mubr.bf16.gmra.mrb[0].mxu0 %v97
    %v1189 = vpop.f32.mrb[0].mxu0
    %v1190 = vadd.f32 %v273, %v1189
    %v1191 = vpop.f32.mrb[0].mxu0
    %v1192 = vadd.f32 %v277, %v1191
    %v1193 = vpop.f32.mrb[0].mxu0
    %v1194 = vpop.f32.mrb[0].mxu0
    %1195 = vdwg.mxu0
    %1196 = vmatprep.subr.bf16.mxu0 %v707
    %1197 = vmatpush1.bf16.msra.mxu0 %v706
    %1198 = vmatprep.subr.bf16.mxu0 %v723
    %1199 = vmatpush1.bf16.msra.mxu0 %v722
    %1200 = vmatprep.subr.bf16.mxu0 %v739
    %1201 = vmatpush1.bf16.msra.mxu0 %v738
    %1202 = vmatprep.subr.bf16.mxu0 %v755
    %1203 = vmatpush1.bf16.msra.mxu0 %v754
    %1204 = vmatprep.subr.bf16.mxu0 %v771
    %1205 = vmatpush1.bf16.msra.mxu0 %v770
    %1206 = vmatprep.subr.bf16.mxu0 %v787
    %1207 = vmatpush1.bf16.msra.mxu0 %v786
    %1208 = vmatprep.subr.bf16.mxu0 %v803
    %1209 = vmatpush1.bf16.msra.mxu0 %v802
    %1210 = vmatprep.subr.bf16.mxu0 %v819
    %1211 = vmatpush1.bf16.msra.mxu0 %v818
    %1212 = vmatprep.subr.bf16.mxu0 0
    %1213 = vmatpush1.bf16.msra.mxu0 0
    %1214 = vmatprep.subr.bf16.mxu0 0
    %1215 = vmatpush1.bf16.msra.mxu0 0
    %1216 = vmatprep.subr.bf16.mxu0 0
    %1217 = vmatpush1.bf16.msra.mxu0 0
    %1218 = vmatprep.subr.bf16.mxu0 0
    %1219 = vmatpush1.bf16.msra.mxu0 0
    %1220 = vmatprep.subr.bf16.mxu0 0
    %1221 = vmatpush1.bf16.msra.mxu0 0
    %1222 = vmatprep.subr.bf16.mxu0 0
    %1223 = vmatpush1.bf16.msra.mxu0 0
    %1224 = vmatprep.subr.bf16.mxu0 0
    %1225 = vmatpush1.bf16.msra.mxu0 0
    %1226 = vmatprep.subr.bf16.mxu0 0
    %1227 = vmatpush1.bf16.msra.mxu0 0
    %1228 = vmatprep.mubr.bf16.mxu0 0
    %1229 = vmatmul.mubr.bf16.gmra.mrb[0].mxu0 %v97
    %v1230 = vpop.f32.mrb[0].mxu0
    %v1231 = vadd.f32 %v281, %v1230
    %v1232 = vpop.f32.mrb[0].mxu0
    %v1233 = vadd.f32 %v285, %v1232
    %v1234 = vpop.f32.mrb[0].mxu0
    %v1235 = vpop.f32.mrb[0].mxu0
    %1236 = vdwg.mxu0
    %1237 = vmatprep.subr.bf16.mxu0 %v709
    %1238 = vmatpush1.bf16.msra.mxu0 %v708
    %1239 = vmatprep.subr.bf16.mxu0 %v725
    %1240 = vmatpush1.bf16.msra.mxu0 %v724
    %1241 = vmatprep.subr.bf16.mxu0 %v741
    %1242 = vmatpush1.bf16.msra.mxu0 %v740
    %1243 = vmatprep.subr.bf16.mxu0 %v757
    %1244 = vmatpush1.bf16.msra.mxu0 %v756
    %1245 = vmatprep.subr.bf16.mxu0 %v773
    %1246 = vmatpush1.bf16.msra.mxu0 %v772
    %1247 = vmatprep.subr.bf16.mxu0 %v789
    %1248 = vmatpush1.bf16.msra.mxu0 %v788
    %1249 = vmatprep.subr.bf16.mxu0 %v805
    %1250 = vmatpush1.bf16.msra.mxu0 %v804
    %1251 = vmatprep.subr.bf16.mxu0 %v821
    %1252 = vmatpush1.bf16.msra.mxu0 %v820
    %1253 = vmatprep.subr.bf16.mxu0 0
    %1254 = vmatpush1.bf16.msra.mxu0 0
    %1255 = vmatprep.subr.bf16.mxu0 0
    %1256 = vmatpush1.bf16.msra.mxu0 0
    %1257 = vmatprep.subr.bf16.mxu0 0
    %1258 = vmatpush1.bf16.msra.mxu0 0
    %1259 = vmatprep.subr.bf16.mxu0 0
    %1260 = vmatpush1.bf16.msra.mxu0 0
    %1261 = vmatprep.subr.bf16.mxu0 0
    %1262 = vmatpush1.bf16.msra.mxu0 0
    %1263 = vmatprep.subr.bf16.mxu0 0
    %1264 = vmatpush1.bf16.msra.mxu0 0
    %1265 = vmatprep.subr.bf16.mxu0 0
    %1266 = vmatpush1.bf16.msra.mxu0 0
    %1267 = vmatprep.subr.bf16.mxu0 0
    %1268 = vmatpush1.bf16.msra.mxu0 0
    %1269 = vmatprep.mubr.bf16.mxu0 0
    %1270 = vmatmul.mubr.bf16.gmra.mrb[0].mxu0 %v97
    %v1271 = vpop.f32.mrb[0].mxu0
    %v1272 = vadd.f32 %v289, %v1271
    %v1273 = vpop.f32.mrb[0].mxu0
    %v1274 = vadd.f32 %v293, %v1273
    %v1275 = vpop.f32.mrb[0].mxu0
    %v1276 = vpop.f32.mrb[0].mxu0
    %1277 = vdwg.mxu0
    %v1278 = vmax.f32 %v985, 0.0
    %v1279 = vmax.f32 %v987, 0.0
    %v1280 = vmax.f32 %v1026, 0.0
    %v1281 = vmax.f32 %v1028, 0.0
    %v1282 = vmax.f32 %v1067, 0.0
    %v1283 = vmax.f32 %v1069, 0.0
    %v1284 = vmax.f32 %v1108, 0.0
    %v1285 = vmax.f32 %v1110, 0.0
    %v1286 = vmax.f32 %v1149, 0.0
    %v1287 = vmax.f32 %v1151, 0.0
    %v1288 = vmax.f32 %v1190, 0.0
    %v1289 = vmax.f32 %v1192, 0.0
    %v1290 = vmax.f32 %v1231, 0.0
    %v1291 = vmax.f32 %v1233, 0.0
    %v1292 = vmax.f32 %v1272, 0.0
    %v1293 = vmax.f32 %v1274, 0.0
    %v1294 = vpack.c.bf16 %v1278, %v1278
    %v1295 = vpack.c.bf16 %v1279, %v1279
    %v1296 = vpack.c.bf16 %v1280, %v1280
    %v1297 = vpack.c.bf16 %v1281, %v1281
    %v1298 = vpack.c.bf16 %v1282, %v1282
    %v1299 = vpack.c.bf16 %v1283, %v1283
    %v1300 = vpack.c.bf16 %v1284, %v1284
    %v1301 = vpack.c.bf16 %v1285, %v1285
    %v1302 = vpack.c.bf16 %v1286, %v1286
    %v1303 = vpack.c.bf16 %v1287, %v1287
    %v1304 = vpack.c.bf16 %v1288, %v1288
    %v1305 = vpack.c.bf16 %v1289, %v1289
    %v1306 = vpack.c.bf16 %v1290, %v1290
    %v1307 = vpack.c.bf16 %v1291, %v1291
    %v1308 = vpack.c.bf16 %v1292, %v1292
    %v1309 = vpack.c.bf16 %v1293, %v1293
    %v1310 = vld [vmem:[#allocation8] sm:$0xf]
    %v1311 = vld [vmem:[#allocation8 + $0x4] sm:$0xf]
    %v1312 = vld [vmem:[#allocation8 + $0x8] sm:$0xf]
    %v1313 = vld [vmem:[#allocation8 + $0xc] sm:$0xf]
    %v1314 = vld [vmem:[#allocation8 + $0x10] sm:$0xf]
    %v1315 = vld [vmem:[#allocation8 + $0x14] sm:$0xf]
    %v1316 = vld [vmem:[#allocation8 + $0x18] sm:$0xf]
    %v1317 = vld [vmem:[#allocation8 + $0x1c] sm:$0xf]
    %v1318 = vld [vmem:[#allocation8 + $0x20] sm:$0xf]
    %v1319 = vld [vmem:[#allocation8 + $0x24] sm:$0xf]
    %v1320 = vld [vmem:[#allocation8 + $0x28] sm:$0xf]
    %v1321 = vld [vmem:[#allocation8 + $0x2c] sm:$0xf]
    %v1322 = vld [vmem:[#allocation8 + $0x30] sm:$0xf]
    %v1323 = vld [vmem:[#allocation8 + $0x34] sm:$0xf]
    %v1324 = vld [vmem:[#allocation8 + $0x38] sm:$0xf]
    %v1325 = vld [vmem:[#allocation8 + $0x3c] sm:$0xf]
    %v1326 = vld [vmem:[#allocation8 + $0x40] sm:$0xf]
    %v1327 = vld [vmem:[#allocation8 + $0x44] sm:$0xf]
    %v1328 = vld [vmem:[#allocation8 + $0x48] sm:$0xf]
    %v1329 = vld [vmem:[#allocation8 + $0x4c] sm:$0xf]
    %v1330 = vld [vmem:[#allocation8 + $0x50] sm:$0xf]
    %v1331 = vld [vmem:[#allocation8 + $0x54] sm:$0xf]
    %v1332 = vld [vmem:[#allocation8 + $0x58] sm:$0xf]
    %v1333 = vld [vmem:[#allocation8 + $0x5c] sm:$0xf]
    %v1334 = vld [vmem:[#allocation8 + $0x60] sm:$0xf]
    %v1335 = vld [vmem:[#allocation8 + $0x64] sm:$0xf]
    %v1336 = vld [vmem:[#allocation8 + $0x68] sm:$0xf]
    %v1337 = vld [vmem:[#allocation8 + $0x6c] sm:$0xf]
    %v1338 = vld [vmem:[#allocation8 + $0x70] sm:$0xf]
    %v1339 = vld [vmem:[#allocation8 + $0x74] sm:$0xf]
    %v1340 = vld [vmem:[#allocation8 + $0x78] sm:$0xf]
    %v1341 = vld [vmem:[#allocation8 + $0x7c] sm:$0xf]
    %v1342 = vld [vmem:[#allocation8 + $0x80] sm:$0xf]
    %v1343 = vld [vmem:[#allocation8 + $0x84] sm:$0xf]
    %v1344 = vld [vmem:[#allocation8 + $0x88] sm:$0xf]
    %v1345 = vld [vmem:[#allocation8 + $0x8c] sm:$0xf]
    %v1346 = vld [vmem:[#allocation8 + $0x90] sm:$0xf]
    %v1347 = vld [vmem:[#allocation8 + $0x94] sm:$0xf]
    %v1348 = vld [vmem:[#allocation8 + $0x98] sm:$0xf]
    %v1349 = vld [vmem:[#allocation8 + $0x9c] sm:$0xf]
    %v1350 = vld [vmem:[#allocation8 + $0xa0] sm:$0xf]
    %v1351 = vld [vmem:[#allocation8 + $0xa4] sm:$0xf]
    %v1352 = vld [vmem:[#allocation8 + $0xa8] sm:$0xf]
    %v1353 = vld [vmem:[#allocation8 + $0xac] sm:$0xf]
    %v1354 = vld [vmem:[#allocation8 + $0xb0] sm:$0xf]
    %v1355 = vld [vmem:[#allocation8 + $0xb4] sm:$0xf]
    %v1356 = vld [vmem:[#allocation8 + $0xb8] sm:$0xf]
    %v1357 = vld [vmem:[#allocation8 + $0xbc] sm:$0xf]
    %v1358 = vld [vmem:[#allocation8 + $0xc0] sm:$0xf]
    %v1359 = vld [vmem:[#allocation8 + $0xc4] sm:$0xf]
    %v1360 = vld [vmem:[#allocation8 + $0xc8] sm:$0xf]
    %v1361 = vld [vmem:[#allocation8 + $0xcc] sm:$0xf]
    %v1362 = vld [vmem:[#allocation8 + $0xd0] sm:$0xf]
    %v1363 = vld [vmem:[#allocation8 + $0xd4] sm:$0xf]
    %v1364 = vld [vmem:[#allocation8 + $0xd8] sm:$0xf]
    %v1365 = vld [vmem:[#allocation8 + $0xdc] sm:$0xf]
    %v1366 = vld [vmem:[#allocation8 + $0xe0] sm:$0xf]
    %v1367 = vld [vmem:[#allocation8 + $0xe4] sm:$0xf]
    %v1368 = vld [vmem:[#allocation8 + $0xe8] sm:$0xf]
    %v1369 = vld [vmem:[#allocation8 + $0xec] sm:$0xf]
    %v1370 = vld [vmem:[#allocation8 + $0xf0] sm:$0xf]
    %v1371 = vld [vmem:[#allocation8 + $0xf4] sm:$0xf]
    %v1372 = vld [vmem:[#allocation8 + $0xf8] sm:$0xf]
    %v1373 = vld [vmem:[#allocation8 + $0xfc] sm:$0xf]
    %v1374 = vld [vmem:[#allocation8 + $0x100] sm:$0xf]
    %v1375 = vld [vmem:[#allocation8 + $0x104] sm:$0xf]
    %v1376 = vld [vmem:[#allocation8 + $0x108] sm:$0xf]
    %v1377 = vld [vmem:[#allocation8 + $0x10c] sm:$0xf]
    %v1378 = vld [vmem:[#allocation8 + $0x110] sm:$0xf]
    %v1379 = vld [vmem:[#allocation8 + $0x114] sm:$0xf]
    %v1380 = vld [vmem:[#allocation8 + $0x118] sm:$0xf]
    %v1381 = vld [vmem:[#allocation8 + $0x11c] sm:$0xf]
    %v1382 = vld [vmem:[#allocation8 + $0x120] sm:$0xf]
    %v1383 = vld [vmem:[#allocation8 + $0x124] sm:$0xf]
    %v1384 = vld [vmem:[#allocation8 + $0x128] sm:$0xf]
    %v1385 = vld [vmem:[#allocation8 + $0x12c] sm:$0xf]
    %v1386 = vld [vmem:[#allocation8 + $0x130] sm:$0xf]
    %v1387 = vld [vmem:[#allocation8 + $0x134] sm:$0xf]
    %v1388 = vld [vmem:[#allocation8 + $0x138] sm:$0xf]
    %v1389 = vld [vmem:[#allocation8 + $0x13c] sm:$0xf]
    %v1390 = vld [vmem:[#allocation8 + $0x140] sm:$0xf]
    %v1391 = vld [vmem:[#allocation8 + $0x144] sm:$0xf]
    %v1392 = vld [vmem:[#allocation8 + $0x148] sm:$0xf]
    %v1393 = vld [vmem:[#allocation8 + $0x14c] sm:$0xf]
    %v1394 = vld [vmem:[#allocation8 + $0x150] sm:$0xf]
    %v1395 = vld [vmem:[#allocation8 + $0x154] sm:$0xf]
    %v1396 = vld [vmem:[#allocation8 + $0x158] sm:$0xf]
    %v1397 = vld [vmem:[#allocation8 + $0x15c] sm:$0xf]
    %v1398 = vld [vmem:[#allocation8 + $0x160] sm:$0xf]
    %v1399 = vld [vmem:[#allocation8 + $0x164] sm:$0xf]
    %v1400 = vld [vmem:[#allocation8 + $0x168] sm:$0xf]
    %v1401 = vld [vmem:[#allocation8 + $0x16c] sm:$0xf]
    %v1402 = vld [vmem:[#allocation8 + $0x170] sm:$0xf]
    %v1403 = vld [vmem:[#allocation8 + $0x174] sm:$0xf]
    %v1404 = vld [vmem:[#allocation8 + $0x178] sm:$0xf]
    %v1405 = vld [vmem:[#allocation8 + $0x17c] sm:$0xf]
    %v1406 = vld [vmem:[#allocation8 + $0x180] sm:$0xf]
    %v1407 = vld [vmem:[#allocation8 + $0x184] sm:$0xf]
    %v1408 = vld [vmem:[#allocation8 + $0x188] sm:$0xf]
    %v1409 = vld [vmem:[#allocation8 + $0x18c] sm:$0xf]
    %v1410 = vld [vmem:[#allocation8 + $0x190] sm:$0xf]
    %v1411 = vld [vmem:[#allocation8 + $0x194] sm:$0xf]
    %v1412 = vld [vmem:[#allocation8 + $0x198] sm:$0xf]
    %v1413 = vld [vmem:[#allocation8 + $0x19c] sm:$0xf]
    %v1414 = vld [vmem:[#allocation8 + $0x1a0] sm:$0xf]
    %v1415 = vld [vmem:[#allocation8 + $0x1a4] sm:$0xf]
    %v1416 = vld [vmem:[#allocation8 + $0x1a8] sm:$0xf]
    %v1417 = vld [vmem:[#allocation8 + $0x1ac] sm:$0xf]
    %v1418 = vld [vmem:[#allocation8 + $0x1b0] sm:$0xf]
    %v1419 = vld [vmem:[#allocation8 + $0x1b4] sm:$0xf]
    %v1420 = vld [vmem:[#allocation8 + $0x1b8] sm:$0xf]
    %v1421 = vld [vmem:[#allocation8 + $0x1bc] sm:$0xf]
    %v1422 = vld [vmem:[#allocation8 + $0x1c0] sm:$0xf]
    %v1423 = vld [vmem:[#allocation8 + $0x1c4] sm:$0xf]
    %v1424 = vld [vmem:[#allocation8 + $0x1c8] sm:$0xf]
    %v1425 = vld [vmem:[#allocation8 + $0x1cc] sm:$0xf]
    %v1426 = vld [vmem:[#allocation8 + $0x1d0] sm:$0xf]
    %v1427 = vld [vmem:[#allocation8 + $0x1d4] sm:$0xf]
    %v1428 = vld [vmem:[#allocation8 + $0x1d8] sm:$0xf]
    %v1429 = vld [vmem:[#allocation8 + $0x1dc] sm:$0xf]
    %v1430 = vld [vmem:[#allocation8 + $0x1e0] sm:$0xf]
    %v1431 = vld [vmem:[#allocation8 + $0x1e4] sm:$0xf]
    %v1432 = vld [vmem:[#allocation8 + $0x1e8] sm:$0xf]
    %v1433 = vld [vmem:[#allocation8 + $0x1ec] sm:$0xf]
    %v1434 = vld [vmem:[#allocation8 + $0x1f0] sm:$0xf]
    %v1435 = vld [vmem:[#allocation8 + $0x1f4] sm:$0xf]
    %v1436 = vld [vmem:[#allocation8 + $0x1f8] sm:$0xf]
    %v1437 = vld [vmem:[#allocation8 + $0x1fc] sm:$0xf]
    %v1438 = vld [vmem:[%s4] sm:$0x1]
    %v1440 = vlaneseq
    %v1441 = vshrl.u32 %v1440, 7
    %v1442 = vsub.s32 0, %v1441
    %v1443 = vrot.slane %v1438, %v1442
    %v1573 = vunpack.c.l.b16 %v1310
    %v1574 = vunpack.c.l.b16 %v1311
    %v1575 = vunpack.c.l.b16 %v1312
    %v1576 = vunpack.c.l.b16 %v1313
    %v1577 = vunpack.c.l.b16 %v1314
    %v1578 = vunpack.c.l.b16 %v1315
    %v1579 = vunpack.c.l.b16 %v1316
    %v1580 = vunpack.c.l.b16 %v1317
    %v1581 = vunpack.c.l.b16 %v1318
    %v1582 = vunpack.c.l.b16 %v1319
    %v1583 = vunpack.c.l.b16 %v1320
    %v1584 = vunpack.c.l.b16 %v1321
    %v1585 = vunpack.c.l.b16 %v1322
    %v1586 = vunpack.c.l.b16 %v1323
    %v1587 = vunpack.c.l.b16 %v1324
    %v1588 = vunpack.c.l.b16 %v1325
    %v1589 = vunpack.c.l.b16 %v1326
    %v1590 = vunpack.c.l.b16 %v1327
    %v1591 = vunpack.c.l.b16 %v1328
    %v1592 = vunpack.c.l.b16 %v1329
    %v1593 = vunpack.c.l.b16 %v1330
    %v1594 = vunpack.c.l.b16 %v1331
    %v1595 = vunpack.c.l.b16 %v1332
    %v1596 = vunpack.c.l.b16 %v1333
    %v1597 = vunpack.c.l.b16 %v1334
    %v1598 = vunpack.c.l.b16 %v1335
    %v1599 = vunpack.c.l.b16 %v1336
    %v1600 = vunpack.c.l.b16 %v1337
    %v1601 = vunpack.c.l.b16 %v1338
    %v1602 = vunpack.c.l.b16 %v1339
    %v1603 = vunpack.c.l.b16 %v1340
    %v1604 = vunpack.c.l.b16 %v1341
    %v1605 = vunpack.c.l.b16 %v1342
    %v1606 = vunpack.c.l.b16 %v1343
    %v1607 = vunpack.c.l.b16 %v1344
    %v1608 = vunpack.c.l.b16 %v1345
    %v1609 = vunpack.c.l.b16 %v1346
    %v1610 = vunpack.c.l.b16 %v1347
    %v1611 = vunpack.c.l.b16 %v1348
    %v1612 = vunpack.c.l.b16 %v1349
    %v1613 = vunpack.c.l.b16 %v1350
    %v1614 = vunpack.c.l.b16 %v1351
    %v1615 = vunpack.c.l.b16 %v1352
    %v1616 = vunpack.c.l.b16 %v1353
    %v1617 = vunpack.c.l.b16 %v1354
    %v1618 = vunpack.c.l.b16 %v1355
    %v1619 = vunpack.c.l.b16 %v1356
    %v1620 = vunpack.c.l.b16 %v1357
    %v1621 = vunpack.c.l.b16 %v1358
    %v1622 = vunpack.c.l.b16 %v1359
    %v1623 = vunpack.c.l.b16 %v1360
    %v1624 = vunpack.c.l.b16 %v1361
    %v1625 = vunpack.c.l.b16 %v1362
    %v1626 = vunpack.c.l.b16 %v1363
    %v1627 = vunpack.c.l.b16 %v1364
    %v1628 = vunpack.c.l.b16 %v1365
    %v1629 = vunpack.c.l.b16 %v1366
    %v1630 = vunpack.c.l.b16 %v1367
    %v1631 = vunpack.c.l.b16 %v1368
    %v1632 = vunpack.c.l.b16 %v1369
    %v1633 = vunpack.c.l.b16 %v1370
    %v1634 = vunpack.c.l.b16 %v1371
    %v1635 = vunpack.c.l.b16 %v1372
    %v1636 = vunpack.c.l.b16 %v1373
    %v1637 = vunpack.c.l.b16 %v1374
    %v1638 = vunpack.c.l.b16 %v1375
    %v1639 = vunpack.c.l.b16 %v1376
    %v1640 = vunpack.c.l.b16 %v1377
    %v1641 = vunpack.c.l.b16 %v1378
    %v1642 = vunpack.c.l.b16 %v1379
    %v1643 = vunpack.c.l.b16 %v1380
    %v1644 = vunpack.c.l.b16 %v1381
    %v1645 = vunpack.c.l.b16 %v1382
    %v1646 = vunpack.c.l.b16 %v1383
    %v1647 = vunpack.c.l.b16 %v1384
    %v1648 = vunpack.c.l.b16 %v1385
    %v1649 = vunpack.c.l.b16 %v1386
    %v1650 = vunpack.c.l.b16 %v1387
    %v1651 = vunpack.c.l.b16 %v1388
    %v1652 = vunpack.c.l.b16 %v1389
    %v1653 = vunpack.c.l.b16 %v1390
    %v1654 = vunpack.c.l.b16 %v1391
    %v1655 = vunpack.c.l.b16 %v1392
    %v1656 = vunpack.c.l.b16 %v1393
    %v1657 = vunpack.c.l.b16 %v1394
    %v1658 = vunpack.c.l.b16 %v1395
    %v1659 = vunpack.c.l.b16 %v1396
    %v1660 = vunpack.c.l.b16 %v1397
    %v1661 = vunpack.c.l.b16 %v1398
    %v1662 = vunpack.c.l.b16 %v1399
    %v1663 = vunpack.c.l.b16 %v1400
    %v1664 = vunpack.c.l.b16 %v1401
    %v1665 = vunpack.c.l.b16 %v1402
    %v1666 = vunpack.c.l.b16 %v1403
    %v1667 = vunpack.c.l.b16 %v1404
    %v1668 = vunpack.c.l.b16 %v1405
    %v1669 = vunpack.c.l.b16 %v1406
    %v1670 = vunpack.c.l.b16 %v1407
    %v1671 = vunpack.c.l.b16 %v1408
    %v1672 = vunpack.c.l.b16 %v1409
    %v1673 = vunpack.c.l.b16 %v1410
    %v1674 = vunpack.c.l.b16 %v1411
    %v1675 = vunpack.c.l.b16 %v1412
    %v1676 = vunpack.c.l.b16 %v1413
    %v1677 = vunpack.c.l.b16 %v1414
    %v1678 = vunpack.c.l.b16 %v1415
    %v1679 = vunpack.c.l.b16 %v1416
    %v1680 = vunpack.c.l.b16 %v1417
    %v1681 = vunpack.c.l.b16 %v1418
    %v1682 = vunpack.c.l.b16 %v1419
    %v1683 = vunpack.c.l.b16 %v1420
    %v1684 = vunpack.c.l.b16 %v1421
    %v1685 = vunpack.c.l.b16 %v1422
    %v1686 = vunpack.c.l.b16 %v1423
    %v1687 = vunpack.c.l.b16 %v1424
    %v1688 = vunpack.c.l.b16 %v1425
    %v1689 = vunpack.c.l.b16 %v1426
    %v1690 = vunpack.c.l.b16 %v1427
    %v1691 = vunpack.c.l.b16 %v1428
    %v1692 = vunpack.c.l.b16 %v1429
    %v1693 = vunpack.c.l.b16 %v1430
    %v1694 = vunpack.c.l.b16 %v1431
    %v1695 = vunpack.c.l.b16 %v1432
    %v1696 = vunpack.c.l.b16 %v1433
    %v1697 = vunpack.c.l.b16 %v1434
    %v1698 = vunpack.c.l.b16 %v1435
    %v1699 = vunpack.c.l.b16 %v1436
    %v1700 = vunpack.c.l.b16 %v1437
    %v1701 = vpack.c.b16 %v1574, %v1573
    %v1702 = vpack.c.b16 %v1576, %v1575
    %v1703 = vpack.c.b16 %v1578, %v1577
    %v1704 = vpack.c.b16 %v1580, %v1579
    %v1705 = vpack.c.b16 %v1582, %v1581
    %v1706 = vpack.c.b16 %v1584, %v1583
    %v1707 = vpack.c.b16 %v1586, %v1585
    %v1708 = vpack.c.b16 %v1588, %v1587
    %v1709 = vpack.c.b16 %v1590, %v1589
    %v1710 = vpack.c.b16 %v1592, %v1591
    %v1711 = vpack.c.b16 %v1594, %v1593
    %v1712 = vpack.c.b16 %v1596, %v1595
    %v1713 = vpack.c.b16 %v1598, %v1597
    %v1714 = vpack.c.b16 %v1600, %v1599
    %v1715 = vpack.c.b16 %v1602, %v1601
    %v1716 = vpack.c.b16 %v1604, %v1603
    %v1717 = vpack.c.b16 %v1606, %v1605
    %v1718 = vpack.c.b16 %v1608, %v1607
    %v1719 = vpack.c.b16 %v1610, %v1609
    %v1720 = vpack.c.b16 %v1612, %v1611
    %v1721 = vpack.c.b16 %v1614, %v1613
    %v1722 = vpack.c.b16 %v1616, %v1615
    %v1723 = vpack.c.b16 %v1618, %v1617
    %v1724 = vpack.c.b16 %v1620, %v1619
    %v1725 = vpack.c.b16 %v1622, %v1621
    %v1726 = vpack.c.b16 %v1624, %v1623
    %v1727 = vpack.c.b16 %v1626, %v1625
    %v1728 = vpack.c.b16 %v1628, %v1627
    %v1729 = vpack.c.b16 %v1630, %v1629
    %v1730 = vpack.c.b16 %v1632, %v1631
    %v1731 = vpack.c.b16 %v1634, %v1633
    %v1732 = vpack.c.b16 %v1636, %v1635
    %v1733 = vpack.c.b16 %v1638, %v1637
    %v1734 = vpack.c.b16 %v1640, %v1639
    %v1735 = vpack.c.b16 %v1642, %v1641
    %v1736 = vpack.c.b16 %v1644, %v1643
    %v1737 = vpack.c.b16 %v1646, %v1645
    %v1738 = vpack.c.b16 %v1648, %v1647
    %v1739 = vpack.c.b16 %v1650, %v1649
    %v1740 = vpack.c.b16 %v1652, %v1651
    %v1741 = vpack.c.b16 %v1654, %v1653
    %v1742 = vpack.c.b16 %v1656, %v1655
    %v1743 = vpack.c.b16 %v1658, %v1657
    %v1744 = vpack.c.b16 %v1660, %v1659
    %v1745 = vpack.c.b16 %v1662, %v1661
    %v1746 = vpack.c.b16 %v1664, %v1663
    %v1747 = vpack.c.b16 %v1666, %v1665
    %v1748 = vpack.c.b16 %v1668, %v1667
    %v1749 = vpack.c.b16 %v1670, %v1669
    %v1750 = vpack.c.b16 %v1672, %v1671
    %v1751 = vpack.c.b16 %v1674, %v1673
    %v1752 = vpack.c.b16 %v1676, %v1675
    %v1753 = vpack.c.b16 %v1678, %v1677
    %v1754 = vpack.c.b16 %v1680, %v1679
    %v1755 = vpack.c.b16 %v1682, %v1681
    %v1756 = vpack.c.b16 %v1684, %v1683
    %v1757 = vpack.c.b16 %v1686, %v1685
    %v1758 = vpack.c.b16 %v1688, %v1687
    %v1759 = vpack.c.b16 %v1690, %v1689
    %v1760 = vpack.c.b16 %v1692, %v1691
    %v1761 = vpack.c.b16 %v1694, %v1693
    %v1762 = vpack.c.b16 %v1696, %v1695
    %v1763 = vpack.c.b16 %v1698, %v1697
    %v1764 = vpack.c.b16 %v1700, %v1699
    %1829 = vmatprep.subr.bf16.mxu0 0
    %1830 = vmatpush1.bf16.msra.mxu0 %v1701
    %1831 = vmatprep.subr.bf16.mxu0 0
    %1832 = vmatpush1.bf16.msra.mxu0 %v1702
    %1833 = vmatprep.subr.bf16.mxu0 0
    %1834 = vmatpush1.bf16.msra.mxu0 %v1703
    %1835 = vmatprep.subr.bf16.mxu0 0
    %1836 = vmatpush1.bf16.msra.mxu0 %v1704
    %1837 = vmatprep.subr.bf16.mxu0 0
    %1838 = vmatpush1.bf16.msra.mxu0 %v1705
    %1839 = vmatprep.subr.bf16.mxu0 0
    %1840 = vmatpush1.bf16.msra.mxu0 %v1706
    %1841 = vmatprep.subr.bf16.mxu0 0
    %1842 = vmatpush1.bf16.msra.mxu0 %v1707
    %1843 = vmatprep.subr.bf16.mxu0 0
    %1844 = vmatpush1.bf16.msra.mxu0 %v1708
    %1845 = vmatprep.subr.bf16.mxu0 0
    %1846 = vmatpush1.bf16.msra.mxu0 %v1709
    %1847 = vmatprep.subr.bf16.mxu0 0
    %1848 = vmatpush1.bf16.msra.mxu0 %v1710
    %1849 = vmatprep.subr.bf16.mxu0 0
    %1850 = vmatpush1.bf16.msra.mxu0 %v1711
    %1851 = vmatprep.subr.bf16.mxu0 0
    %1852 = vmatpush1.bf16.msra.mxu0 %v1712
    %1853 = vmatprep.subr.bf16.mxu0 0
    %1854 = vmatpush1.bf16.msra.mxu0 %v1713
    %1855 = vmatprep.subr.bf16.mxu0 0
    %1856 = vmatpush1.bf16.msra.mxu0 %v1714
    %1857 = vmatprep.subr.bf16.mxu0 0
    %1858 = vmatpush1.bf16.msra.mxu0 %v1715
    %1859 = vmatprep.subr.bf16.mxu0 0
    %1860 = vmatpush1.bf16.msra.mxu0 %v1716
    %1861 = vmatprep.mubr.bf16.mxu0 %v1295
    %1862 = vmatmul.mubr.bf16.gmra.mrb[0].mxu0 %v1294
    %v1863 = vpop.f32.mrb[0].mxu0
    %v1864 = vadd.f32 %v1443, %v1863
    %v1865 = vpop.f32.mrb[0].mxu0
    %v1866 = vpop.f32.mrb[0].mxu0
    %v1867 = vpop.f32.mrb[0].mxu0
    %1868 = vdwg.mxu0
    %1869 = vmatprep.subr.bf16.mxu0 0
    %1870 = vmatpush1.bf16.msra.mxu0 %v1717
    %1871 = vmatprep.subr.bf16.mxu0 0
    %1872 = vmatpush1.bf16.msra.mxu0 %v1718
    %1873 = vmatprep.subr.bf16.mxu0 0
    %1874 = vmatpush1.bf16.msra.mxu0 %v1719
    %1875 = vmatprep.subr.bf16.mxu0 0
    %1876 = vmatpush1.bf16.msra.mxu0 %v1720
    %1877 = vmatprep.subr.bf16.mxu0 0
    %1878 = vmatpush1.bf16.msra.mxu0 %v1721
    %1879 = vmatprep.subr.bf16.mxu0 0
    %1880 = vmatpush1.bf16.msra.mxu0 %v1722
    %1881 = vmatprep.subr.bf16.mxu0 0
    %1882 = vmatpush1.bf16.msra.mxu0 %v1723
    %1883 = vmatprep.subr.bf16.mxu0 0
    %1884 = vmatpush1.bf16.msra.mxu0 %v1724
    %1885 = vmatprep.subr.bf16.mxu0 0
    %1886 = vmatpush1.bf16.msra.mxu0 %v1725
    %1887 = vmatprep.subr.bf16.mxu0 0
    %1888 = vmatpush1.bf16.msra.mxu0 %v1726
    %1889 = vmatprep.subr.bf16.mxu0 0
    %1890 = vmatpush1.bf16.msra.mxu0 %v1727
    %1891 = vmatprep.subr.bf16.mxu0 0
    %1892 = vmatpush1.bf16.msra.mxu0 %v1728
    %1893 = vmatprep.subr.bf16.mxu0 0
    %1894 = vmatpush1.bf16.msra.mxu0 %v1729
    %1895 = vmatprep.subr.bf16.mxu0 0
    %1896 = vmatpush1.bf16.msra.mxu0 %v1730
    %1897 = vmatprep.subr.bf16.mxu0 0
    %1898 = vmatpush1.bf16.msra.mxu0 %v1731
    %1899 = vmatprep.subr.bf16.mxu0 0
    %1900 = vmatpush1.bf16.msra.mxu0 %v1732
    %1901 = vmatprep.mubr.bf16.mxu0 %v1297
    %1902 = vmatmul.mubr.bf16.gmra.mrb[0].mxu0 %v1296
    %v1903 = vpop.f32.mrb[0].mxu0
    %v1904 = vadd.f32 %v1864, %v1903
    %v1905 = vpop.f32.mrb[0].mxu0
    %v1906 = vpop.f32.mrb[0].mxu0
    %v1907 = vpop.f32.mrb[0].mxu0
    %1908 = vdwg.mxu0
    %1909 = vmatprep.subr.bf16.mxu0 0
    %1910 = vmatpush1.bf16.msra.mxu0 %v1733
    %1911 = vmatprep.subr.bf16.mxu0 0
    %1912 = vmatpush1.bf16.msra.mxu0 %v1734
    %1913 = vmatprep.subr.bf16.mxu0 0
    %1914 = vmatpush1.bf16.msra.mxu0 %v1735
    %1915 = vmatprep.subr.bf16.mxu0 0
    %1916 = vmatpush1.bf16.msra.mxu0 %v1736
    %1917 = vmatprep.subr.bf16.mxu0 0
    %1918 = vmatpush1.bf16.msra.mxu0 %v1737
    %1919 = vmatprep.subr.bf16.mxu0 0
    %1920 = vmatpush1.bf16.msra.mxu0 %v1738
    %1921 = vmatprep.subr.bf16.mxu0 0
    %1922 = vmatpush1.bf16.msra.mxu0 %v1739
    %1923 = vmatprep.subr.bf16.mxu0 0
    %1924 = vmatpush1.bf16.msra.mxu0 %v1740
    %1925 = vmatprep.subr.bf16.mxu0 0
    %1926 = vmatpush1.bf16.msra.mxu0 %v1741
    %1927 = vmatprep.subr.bf16.mxu0 0
    %1928 = vmatpush1.bf16.msra.mxu0 %v1742
    %1929 = vmatprep.subr.bf16.mxu0 0
    %1930 = vmatpush1.bf16.msra.mxu0 %v1743
    %1931 = vmatprep.subr.bf16.mxu0 0
    %1932 = vmatpush1.bf16.msra.mxu0 %v1744
    %1933 = vmatprep.subr.bf16.mxu0 0
    %1934 = vmatpush1.bf16.msra.mxu0 %v1745
    %1935 = vmatprep.subr.bf16.mxu0 0
    %1936 = vmatpush1.bf16.msra.mxu0 %v1746
    %1937 = vmatprep.subr.bf16.mxu0 0
    %1938 = vmatpush1.bf16.msra.mxu0 %v1747
    %1939 = vmatprep.subr.bf16.mxu0 0
    %1940 = vmatpush1.bf16.msra.mxu0 %v1748
    %1941 = vmatprep.mubr.bf16.mxu0 %v1299
    %1942 = vmatmul.mubr.bf16.gmra.mrb[0].mxu0 %v1298
    %v1943 = vpop.f32.mrb[0].mxu0
    %v1944 = vadd.f32 %v1904, %v1943
    %v1945 = vpop.f32.mrb[0].mxu0
    %v1946 = vpop.f32.mrb[0].mxu0
    %v1947 = vpop.f32.mrb[0].mxu0
    %1948 = vdwg.mxu0
    %1949 = vmatprep.subr.bf16.mxu0 0
    %1950 = vmatpush1.bf16.msra.mxu0 %v1749
    %1951 = vmatprep.subr.bf16.mxu0 0
    %1952 = vmatpush1.bf16.msra.mxu0 %v1750
    %1953 = vmatprep.subr.bf16.mxu0 0
    %1954 = vmatpush1.bf16.msra.mxu0 %v1751
    %1955 = vmatprep.subr.bf16.mxu0 0
    %1956 = vmatpush1.bf16.msra.mxu0 %v1752
    %1957 = vmatprep.subr.bf16.mxu0 0
    %1958 = vmatpush1.bf16.msra.mxu0 %v1753
    %1959 = vmatprep.subr.bf16.mxu0 0
    %1960 = vmatpush1.bf16.msra.mxu0 %v1754
    %1961 = vmatprep.subr.bf16.mxu0 0
    %1962 = vmatpush1.bf16.msra.mxu0 %v1755
    %1963 = vmatprep.subr.bf16.mxu0 0
    %1964 = vmatpush1.bf16.msra.mxu0 %v1756
    %1965 = vmatprep.subr.bf16.mxu0 0
    %1966 = vmatpush1.bf16.msra.mxu0 %v1757
    %1967 = vmatprep.subr.bf16.mxu0 0
    %1968 = vmatpush1.bf16.msra.mxu0 %v1758
    %1969 = vmatprep.subr.bf16.mxu0 0
    %1970 = vmatpush1.bf16.msra.mxu0 %v1759
    %1971 = vmatprep.subr.bf16.mxu0 0
    %1972 = vmatpush1.bf16.msra.mxu0 %v1760
    %1973 = vmatprep.subr.bf16.mxu0 0
    %1974 = vmatpush1.bf16.msra.mxu0 %v1761
    %1975 = vmatprep.subr.bf16.mxu0 0
    %1976 = vmatpush1.bf16.msra.mxu0 %v1762
    %1977 = vmatprep.subr.bf16.mxu0 0
    %1978 = vmatpush1.bf16.msra.mxu0 %v1763
    %1979 = vmatprep.subr.bf16.mxu0 0
    %1980 = vmatpush1.bf16.msra.mxu0 %v1764
    %1981 = vmatprep.mubr.bf16.mxu0 %v1301
    %1982 = vmatmul.mubr.bf16.gmra.mrb[0].mxu0 %v1300
    %v1983 = vpop.f32.mrb[0].mxu0
    %v1984 = vadd.f32 %v1944, %v1983
    %v1985 = vpop.f32.mrb[0].mxu0
    %v1986 = vpop.f32.mrb[0].mxu0
    %v1987 = vpop.f32.mrb[0].mxu0
    %1988 = vdwg.mxu0
    %v1989 = vtanh.pop %v1984
    %v1990 = vld [vmem:[#allocation10] sm:$0xf]
    %v1991 = vld [vmem:[#allocation10 + $0x4] sm:$0xf]
    %v1992 = vld [vmem:[#allocation10 + $0x8] sm:$0xf]
    %v1993 = vld [vmem:[#allocation10 + $0xc] sm:$0xf]
    %v1994 = vld [vmem:[#allocation10 + $0x10] sm:$0xf]
    %v1995 = vld [vmem:[#allocation10 + $0x14] sm:$0xf]
    %v1996 = vld [vmem:[#allocation10 + $0x18] sm:$0xf]
    %v1997 = vld [vmem:[#allocation10 + $0x1c] sm:$0xf]
    %v1998 = vld [vmem:[#allocation10 + $0x20] sm:$0xf]
    %v1999 = vld [vmem:[#allocation10 + $0x24] sm:$0xf]
    %v2000 = vld [vmem:[#allocation10 + $0x28] sm:$0xf]
    %v2001 = vld [vmem:[#allocation10 + $0x2c] sm:$0xf]
    %v2002 = vld [vmem:[#allocation10 + $0x30] sm:$0xf]
    %v2003 = vld [vmem:[#allocation10 + $0x34] sm:$0xf]
    %v2004 = vld [vmem:[#allocation10 + $0x38] sm:$0xf]
    %v2005 = vld [vmem:[#allocation10 + $0x3c] sm:$0xf]
    %v2006 = vld [vmem:[#allocation10 + $0x40] sm:$0xf]
    %v2007 = vld [vmem:[#allocation10 + $0x44] sm:$0xf]
    %v2008 = vld [vmem:[#allocation10 + $0x48] sm:$0xf]
    %v2009 = vld [vmem:[#allocation10 + $0x4c] sm:$0xf]
    %v2010 = vld [vmem:[#allocation10 + $0x50] sm:$0xf]
    %v2011 = vld [vmem:[#allocation10 + $0x54] sm:$0xf]
    %v2012 = vld [vmem:[#allocation10 + $0x58] sm:$0xf]
    %v2013 = vld [vmem:[#allocation10 + $0x5c] sm:$0xf]
    %v2014 = vld [vmem:[#allocation10 + $0x60] sm:$0xf]
    %v2015 = vld [vmem:[#allocation10 + $0x64] sm:$0xf]
    %v2016 = vld [vmem:[#allocation10 + $0x68] sm:$0xf]
    %v2017 = vld [vmem:[#allocation10 + $0x6c] sm:$0xf]
    %v2018 = vld [vmem:[#allocation10 + $0x70] sm:$0xf]
    %v2019 = vld [vmem:[#allocation10 + $0x74] sm:$0xf]
    %v2020 = vld [vmem:[#allocation10 + $0x78] sm:$0xf]
    %v2021 = vld [vmem:[#allocation10 + $0x7c] sm:$0xf]
    %v2022 = vld [vmem:[#allocation10 + $0x80] sm:$0xf]
    %v2023 = vld [vmem:[#allocation10 + $0x84] sm:$0xf]
    %v2024 = vld [vmem:[#allocation10 + $0x88] sm:$0xf]
    %v2025 = vld [vmem:[#allocation10 + $0x8c] sm:$0xf]
    %v2026 = vld [vmem:[#allocation10 + $0x90] sm:$0xf]
    %v2027 = vld [vmem:[#allocation10 + $0x94] sm:$0xf]
    %v2028 = vld [vmem:[#allocation10 + $0x98] sm:$0xf]
    %v2029 = vld [vmem:[#allocation10 + $0x9c] sm:$0xf]
    %v2030 = vld [vmem:[#allocation10 + $0xa0] sm:$0xf]
    %v2031 = vld [vmem:[#allocation10 + $0xa4] sm:$0xf]
    %v2032 = vld [vmem:[#allocation10 + $0xa8] sm:$0xf]
    %v2033 = vld [vmem:[#allocation10 + $0xac] sm:$0xf]
    %v2034 = vld [vmem:[#allocation10 + $0xb0] sm:$0xf]
    %v2035 = vld [vmem:[#allocation10 + $0xb4] sm:$0xf]
    %v2036 = vld [vmem:[#allocation10 + $0xb8] sm:$0xf]
    %v2037 = vld [vmem:[#allocation10 + $0xbc] sm:$0xf]
    %v2038 = vld [vmem:[#allocation10 + $0xc0] sm:$0xf]
    %v2039 = vld [vmem:[#allocation10 + $0xc4] sm:$0xf]
    %v2040 = vld [vmem:[#allocation10 + $0xc8] sm:$0xf]
    %v2041 = vld [vmem:[#allocation10 + $0xcc] sm:$0xf]
    %v2042 = vld [vmem:[#allocation10 + $0xd0] sm:$0xf]
    %v2043 = vld [vmem:[#allocation10 + $0xd4] sm:$0xf]
    %v2044 = vld [vmem:[#allocation10 + $0xd8] sm:$0xf]
    %v2045 = vld [vmem:[#allocation10 + $0xdc] sm:$0xf]
    %v2046 = vld [vmem:[#allocation10 + $0xe0] sm:$0xf]
    %v2047 = vld [vmem:[#allocation10 + $0xe4] sm:$0xf]
    %v2048 = vld [vmem:[#allocation10 + $0xe8] sm:$0xf]
    %v2049 = vld [vmem:[#allocation10 + $0xec] sm:$0xf]
    %v2050 = vld [vmem:[#allocation10 + $0xf0] sm:$0xf]
    %v2051 = vld [vmem:[#allocation10 + $0xf4] sm:$0xf]
    %v2052 = vld [vmem:[#allocation10 + $0xf8] sm:$0xf]
    %v2053 = vld [vmem:[#allocation10 + $0xfc] sm:$0xf]
    %v2054 = vld [vmem:[#allocation10 + $0x100] sm:$0xf]
    %v2055 = vld [vmem:[#allocation10 + $0x104] sm:$0xf]
    %v2056 = vld [vmem:[#allocation10 + $0x108] sm:$0xf]
    %v2057 = vld [vmem:[#allocation10 + $0x10c] sm:$0xf]
    %v2058 = vld [vmem:[#allocation10 + $0x110] sm:$0xf]
    %v2059 = vld [vmem:[#allocation10 + $0x114] sm:$0xf]
    %v2060 = vld [vmem:[#allocation10 + $0x118] sm:$0xf]
    %v2061 = vld [vmem:[#allocation10 + $0x11c] sm:$0xf]
    %v2062 = vld [vmem:[#allocation10 + $0x120] sm:$0xf]
    %v2063 = vld [vmem:[#allocation10 + $0x124] sm:$0xf]
    %v2064 = vld [vmem:[#allocation10 + $0x128] sm:$0xf]
    %v2065 = vld [vmem:[#allocation10 + $0x12c] sm:$0xf]
    %v2066 = vld [vmem:[#allocation10 + $0x130] sm:$0xf]
    %v2067 = vld [vmem:[#allocation10 + $0x134] sm:$0xf]
    %v2068 = vld [vmem:[#allocation10 + $0x138] sm:$0xf]
    %v2069 = vld [vmem:[#allocation10 + $0x13c] sm:$0xf]
    %v2070 = vld [vmem:[#allocation10 + $0x140] sm:$0xf]
    %v2071 = vld [vmem:[#allocation10 + $0x144] sm:$0xf]
    %v2072 = vld [vmem:[#allocation10 + $0x148] sm:$0xf]
    %v2073 = vld [vmem:[#allocation10 + $0x14c] sm:$0xf]
    %v2074 = vld [vmem:[#allocation10 + $0x150] sm:$0xf]
    %v2075 = vld [vmem:[#allocation10 + $0x154] sm:$0xf]
    %v2076 = vld [vmem:[#allocation10 + $0x158] sm:$0xf]
    %v2077 = vld [vmem:[#allocation10 + $0x15c] sm:$0xf]
    %v2078 = vld [vmem:[#allocation10 + $0x160] sm:$0xf]
    %v2079 = vld [vmem:[#allocation10 + $0x164] sm:$0xf]
    %v2080 = vld [vmem:[#allocation10 + $0x168] sm:$0xf]
    %v2081 = vld [vmem:[#allocation10 + $0x16c] sm:$0xf]
    %v2082 = vld [vmem:[#allocation10 + $0x170] sm:$0xf]
    %v2083 = vld [vmem:[#allocation10 + $0x174] sm:$0xf]
    %v2084 = vld [vmem:[#allocation10 + $0x178] sm:$0xf]
    %v2085 = vld [vmem:[#allocation10 + $0x17c] sm:$0xf]
    %v2086 = vld [vmem:[#allocation10 + $0x180] sm:$0xf]
    %v2087 = vld [vmem:[#allocation10 + $0x184] sm:$0xf]
    %v2088 = vld [vmem:[#allocation10 + $0x188] sm:$0xf]
    %v2089 = vld [vmem:[#allocation10 + $0x18c] sm:$0xf]
    %v2090 = vld [vmem:[#allocation10 + $0x190] sm:$0xf]
    %v2091 = vld [vmem:[#allocation10 + $0x194] sm:$0xf]
    %v2092 = vld [vmem:[#allocation10 + $0x198] sm:$0xf]
    %v2093 = vld [vmem:[#allocation10 + $0x19c] sm:$0xf]
    %v2094 = vld [vmem:[#allocation10 + $0x1a0] sm:$0xf]
    %v2095 = vld [vmem:[#allocation10 + $0x1a4] sm:$0xf]
    %v2096 = vld [vmem:[#allocation10 + $0x1a8] sm:$0xf]
    %v2097 = vld [vmem:[#allocation10 + $0x1ac] sm:$0xf]
    %v2098 = vld [vmem:[#allocation10 + $0x1b0] sm:$0xf]
    %v2099 = vld [vmem:[#allocation10 + $0x1b4] sm:$0xf]
    %v2100 = vld [vmem:[#allocation10 + $0x1b8] sm:$0xf]
    %v2101 = vld [vmem:[#allocation10 + $0x1bc] sm:$0xf]
    %v2102 = vld [vmem:[#allocation10 + $0x1c0] sm:$0xf]
    %v2103 = vld [vmem:[#allocation10 + $0x1c4] sm:$0xf]
    %v2104 = vld [vmem:[#allocation10 + $0x1c8] sm:$0xf]
    %v2105 = vld [vmem:[#allocation10 + $0x1cc] sm:$0xf]
    %v2106 = vld [vmem:[#allocation10 + $0x1d0] sm:$0xf]
    %v2107 = vld [vmem:[#allocation10 + $0x1d4] sm:$0xf]
    %v2108 = vld [vmem:[#allocation10 + $0x1d8] sm:$0xf]
    %v2109 = vld [vmem:[#allocation10 + $0x1dc] sm:$0xf]
    %v2110 = vld [vmem:[#allocation10 + $0x1e0] sm:$0xf]
    %v2111 = vld [vmem:[#allocation10 + $0x1e4] sm:$0xf]
    %v2112 = vld [vmem:[#allocation10 + $0x1e8] sm:$0xf]
    %v2113 = vld [vmem:[#allocation10 + $0x1ec] sm:$0xf]
    %v2114 = vld [vmem:[#allocation10 + $0x1f0] sm:$0xf]
    %v2115 = vld [vmem:[#allocation10 + $0x1f4] sm:$0xf]
    %v2116 = vld [vmem:[#allocation10 + $0x1f8] sm:$0xf]
    %v2117 = vld [vmem:[#allocation10 + $0x1fc] sm:$0xf]
    %v2118 = vld [vmem:[%s6] sm:$0x1]
    %v2120 = vlaneseq
    %v2121 = vshrl.u32 %v2120, 7
    %v2122 = vsub.s32 0, %v2121
    %v2123 = vrot.slane %v2118, %v2122
    %v2253 = vunpack.c.l.b16 %v1990
    %v2254 = vunpack.c.l.b16 %v1991
    %v2255 = vunpack.c.l.b16 %v1992
    %v2256 = vunpack.c.l.b16 %v1993
    %v2257 = vunpack.c.l.b16 %v1994
    %v2258 = vunpack.c.l.b16 %v1995
    %v2259 = vunpack.c.l.b16 %v1996
    %v2260 = vunpack.c.l.b16 %v1997
    %v2261 = vunpack.c.l.b16 %v1998
    %v2262 = vunpack.c.l.b16 %v1999
    %v2263 = vunpack.c.l.b16 %v2000
    %v2264 = vunpack.c.l.b16 %v2001
    %v2265 = vunpack.c.l.b16 %v2002
    %v2266 = vunpack.c.l.b16 %v2003
    %v2267 = vunpack.c.l.b16 %v2004
    %v2268 = vunpack.c.l.b16 %v2005
    %v2269 = vunpack.c.l.b16 %v2006
    %v2270 = vunpack.c.l.b16 %v2007
    %v2271 = vunpack.c.l.b16 %v2008
    %v2272 = vunpack.c.l.b16 %v2009
    %v2273 = vunpack.c.l.b16 %v2010
    %v2274 = vunpack.c.l.b16 %v2011
    %v2275 = vunpack.c.l.b16 %v2012
    %v2276 = vunpack.c.l.b16 %v2013
    %v2277 = vunpack.c.l.b16 %v2014
    %v2278 = vunpack.c.l.b16 %v2015
    %v2279 = vunpack.c.l.b16 %v2016
    %v2280 = vunpack.c.l.b16 %v2017
    %v2281 = vunpack.c.l.b16 %v2018
    %v2282 = vunpack.c.l.b16 %v2019
    %v2283 = vunpack.c.l.b16 %v2020
    %v2284 = vunpack.c.l.b16 %v2021
    %v2285 = vunpack.c.l.b16 %v2022
    %v2286 = vunpack.c.l.b16 %v2023
    %v2287 = vunpack.c.l.b16 %v2024
    %v2288 = vunpack.c.l.b16 %v2025
    %v2289 = vunpack.c.l.b16 %v2026
    %v2290 = vunpack.c.l.b16 %v2027
    %v2291 = vunpack.c.l.b16 %v2028
    %v2292 = vunpack.c.l.b16 %v2029
    %v2293 = vunpack.c.l.b16 %v2030
    %v2294 = vunpack.c.l.b16 %v2031
    %v2295 = vunpack.c.l.b16 %v2032
    %v2296 = vunpack.c.l.b16 %v2033
    %v2297 = vunpack.c.l.b16 %v2034
    %v2298 = vunpack.c.l.b16 %v2035
    %v2299 = vunpack.c.l.b16 %v2036
    %v2300 = vunpack.c.l.b16 %v2037
    %v2301 = vunpack.c.l.b16 %v2038
    %v2302 = vunpack.c.l.b16 %v2039
    %v2303 = vunpack.c.l.b16 %v2040
    %v2304 = vunpack.c.l.b16 %v2041
    %v2305 = vunpack.c.l.b16 %v2042
    %v2306 = vunpack.c.l.b16 %v2043
    %v2307 = vunpack.c.l.b16 %v2044
    %v2308 = vunpack.c.l.b16 %v2045
    %v2309 = vunpack.c.l.b16 %v2046
    %v2310 = vunpack.c.l.b16 %v2047
    %v2311 = vunpack.c.l.b16 %v2048
    %v2312 = vunpack.c.l.b16 %v2049
    %v2313 = vunpack.c.l.b16 %v2050
    %v2314 = vunpack.c.l.b16 %v2051
    %v2315 = vunpack.c.l.b16 %v2052
    %v2316 = vunpack.c.l.b16 %v2053
    %v2317 = vunpack.c.l.b16 %v2054
    %v2318 = vunpack.c.l.b16 %v2055
    %v2319 = vunpack.c.l.b16 %v2056
    %v2320 = vunpack.c.l.b16 %v2057
    %v2321 = vunpack.c.l.b16 %v2058
    %v2322 = vunpack.c.l.b16 %v2059
    %v2323 = vunpack.c.l.b16 %v2060
    %v2324 = vunpack.c.l.b16 %v2061
    %v2325 = vunpack.c.l.b16 %v2062
    %v2326 = vunpack.c.l.b16 %v2063
    %v2327 = vunpack.c.l.b16 %v2064
    %v2328 = vunpack.c.l.b16 %v2065
    %v2329 = vunpack.c.l.b16 %v2066
    %v2330 = vunpack.c.l.b16 %v2067
    %v2331 = vunpack.c.l.b16 %v2068
    %v2332 = vunpack.c.l.b16 %v2069
    %v2333 = vunpack.c.l.b16 %v2070
    %v2334 = vunpack.c.l.b16 %v2071
    %v2335 = vunpack.c.l.b16 %v2072
    %v2336 = vunpack.c.l.b16 %v2073
    %v2337 = vunpack.c.l.b16 %v2074
    %v2338 = vunpack.c.l.b16 %v2075
    %v2339 = vunpack.c.l.b16 %v2076
    %v2340 = vunpack.c.l.b16 %v2077
    %v2341 = vunpack.c.l.b16 %v2078
    %v2342 = vunpack.c.l.b16 %v2079
    %v2343 = vunpack.c.l.b16 %v2080
    %v2344 = vunpack.c.l.b16 %v2081
    %v2345 = vunpack.c.l.b16 %v2082
    %v2346 = vunpack.c.l.b16 %v2083
    %v2347 = vunpack.c.l.b16 %v2084
    %v2348 = vunpack.c.l.b16 %v2085
    %v2349 = vunpack.c.l.b16 %v2086
    %v2350 = vunpack.c.l.b16 %v2087
    %v2351 = vunpack.c.l.b16 %v2088
    %v2352 = vunpack.c.l.b16 %v2089
    %v2353 = vunpack.c.l.b16 %v2090
    %v2354 = vunpack.c.l.b16 %v2091
    %v2355 = vunpack.c.l.b16 %v2092
    %v2356 = vunpack.c.l.b16 %v2093
    %v2357 = vunpack.c.l.b16 %v2094
    %v2358 = vunpack.c.l.b16 %v2095
    %v2359 = vunpack.c.l.b16 %v2096
    %v2360 = vunpack.c.l.b16 %v2097
    %v2361 = vunpack.c.l.b16 %v2098
    %v2362 = vunpack.c.l.b16 %v2099
    %v2363 = vunpack.c.l.b16 %v2100
    %v2364 = vunpack.c.l.b16 %v2101
    %v2365 = vunpack.c.l.b16 %v2102
    %v2366 = vunpack.c.l.b16 %v2103
    %v2367 = vunpack.c.l.b16 %v2104
    %v2368 = vunpack.c.l.b16 %v2105
    %v2369 = vunpack.c.l.b16 %v2106
    %v2370 = vunpack.c.l.b16 %v2107
    %v2371 = vunpack.c.l.b16 %v2108
    %v2372 = vunpack.c.l.b16 %v2109
    %v2373 = vunpack.c.l.b16 %v2110
    %v2374 = vunpack.c.l.b16 %v2111
    %v2375 = vunpack.c.l.b16 %v2112
    %v2376 = vunpack.c.l.b16 %v2113
    %v2377 = vunpack.c.l.b16 %v2114
    %v2378 = vunpack.c.l.b16 %v2115
    %v2379 = vunpack.c.l.b16 %v2116
    %v2380 = vunpack.c.l.b16 %v2117
    %v2381 = vpack.c.b16 %v2254, %v2253
    %v2382 = vpack.c.b16 %v2256, %v2255
    %v2383 = vpack.c.b16 %v2258, %v2257
    %v2384 = vpack.c.b16 %v2260, %v2259
    %v2385 = vpack.c.b16 %v2262, %v2261
    %v2386 = vpack.c.b16 %v2264, %v2263
    %v2387 = vpack.c.b16 %v2266, %v2265
    %v2388 = vpack.c.b16 %v2268, %v2267
    %v2389 = vpack.c.b16 %v2270, %v2269
    %v2390 = vpack.c.b16 %v2272, %v2271
    %v2391 = vpack.c.b16 %v2274, %v2273
    %v2392 = vpack.c.b16 %v2276, %v2275
    %v2393 = vpack.c.b16 %v2278, %v2277
    %v2394 = vpack.c.b16 %v2280, %v2279
    %v2395 = vpack.c.b16 %v2282, %v2281
    %v2396 = vpack.c.b16 %v2284, %v2283
    %v2397 = vpack.c.b16 %v2286, %v2285
    %v2398 = vpack.c.b16 %v2288, %v2287
    %v2399 = vpack.c.b16 %v2290, %v2289
    %v2400 = vpack.c.b16 %v2292, %v2291
    %v2401 = vpack.c.b16 %v2294, %v2293
    %v2402 = vpack.c.b16 %v2296, %v2295
    %v2403 = vpack.c.b16 %v2298, %v2297
    %v2404 = vpack.c.b16 %v2300, %v2299
    %v2405 = vpack.c.b16 %v2302, %v2301
    %v2406 = vpack.c.b16 %v2304, %v2303
    %v2407 = vpack.c.b16 %v2306, %v2305
    %v2408 = vpack.c.b16 %v2308, %v2307
    %v2409 = vpack.c.b16 %v2310, %v2309
    %v2410 = vpack.c.b16 %v2312, %v2311
    %v2411 = vpack.c.b16 %v2314, %v2313
    %v2412 = vpack.c.b16 %v2316, %v2315
    %v2413 = vpack.c.b16 %v2318, %v2317
    %v2414 = vpack.c.b16 %v2320, %v2319
    %v2415 = vpack.c.b16 %v2322, %v2321
    %v2416 = vpack.c.b16 %v2324, %v2323
    %v2417 = vpack.c.b16 %v2326, %v2325
    %v2418 = vpack.c.b16 %v2328, %v2327
    %v2419 = vpack.c.b16 %v2330, %v2329
    %v2420 = vpack.c.b16 %v2332, %v2331
    %v2421 = vpack.c.b16 %v2334, %v2333
    %v2422 = vpack.c.b16 %v2336, %v2335
    %v2423 = vpack.c.b16 %v2338, %v2337
    %v2424 = vpack.c.b16 %v2340, %v2339
    %v2425 = vpack.c.b16 %v2342, %v2341
    %v2426 = vpack.c.b16 %v2344, %v2343
    %v2427 = vpack.c.b16 %v2346, %v2345
    %v2428 = vpack.c.b16 %v2348, %v2347
    %v2429 = vpack.c.b16 %v2350, %v2349
    %v2430 = vpack.c.b16 %v2352, %v2351
    %v2431 = vpack.c.b16 %v2354, %v2353
    %v2432 = vpack.c.b16 %v2356, %v2355
    %v2433 = vpack.c.b16 %v2358, %v2357
    %v2434 = vpack.c.b16 %v2360, %v2359
    %v2435 = vpack.c.b16 %v2362, %v2361
    %v2436 = vpack.c.b16 %v2364, %v2363
    %v2437 = vpack.c.b16 %v2366, %v2365
    %v2438 = vpack.c.b16 %v2368, %v2367
    %v2439 = vpack.c.b16 %v2370, %v2369
    %v2440 = vpack.c.b16 %v2372, %v2371
    %v2441 = vpack.c.b16 %v2374, %v2373
    %v2442 = vpack.c.b16 %v2376, %v2375
    %v2443 = vpack.c.b16 %v2378, %v2377
    %v2444 = vpack.c.b16 %v2380, %v2379
    %2509 = vmatprep.subr.bf16.mxu0 0
    %2510 = vmatpush1.bf16.msra.mxu0 %v2381
    %2511 = vmatprep.subr.bf16.mxu0 0
    %2512 = vmatpush1.bf16.msra.mxu0 %v2382
    %2513 = vmatprep.subr.bf16.mxu0 0
    %2514 = vmatpush1.bf16.msra.mxu0 %v2383
    %2515 = vmatprep.subr.bf16.mxu0 0
    %2516 = vmatpush1.bf16.msra.mxu0 %v2384
    %2517 = vmatprep.subr.bf16.mxu0 0
    %2518 = vmatpush1.bf16.msra.mxu0 %v2385
    %2519 = vmatprep.subr.bf16.mxu0 0
    %2520 = vmatpush1.bf16.msra.mxu0 %v2386
    %2521 = vmatprep.subr.bf16.mxu0 0
    %2522 = vmatpush1.bf16.msra.mxu0 %v2387
    %2523 = vmatprep.subr.bf16.mxu0 0
    %2524 = vmatpush1.bf16.msra.mxu0 %v2388
    %2525 = vmatprep.subr.bf16.mxu0 0
    %2526 = vmatpush1.bf16.msra.mxu0 %v2389
    %2527 = vmatprep.subr.bf16.mxu0 0
    %2528 = vmatpush1.bf16.msra.mxu0 %v2390
    %2529 = vmatprep.subr.bf16.mxu0 0
    %2530 = vmatpush1.bf16.msra.mxu0 %v2391
    %2531 = vmatprep.subr.bf16.mxu0 0
    %2532 = vmatpush1.bf16.msra.mxu0 %v2392
    %2533 = vmatprep.subr.bf16.mxu0 0
    %2534 = vmatpush1.bf16.msra.mxu0 %v2393
    %2535 = vmatprep.subr.bf16.mxu0 0
    %2536 = vmatpush1.bf16.msra.mxu0 %v2394
    %2537 = vmatprep.subr.bf16.mxu0 0
    %2538 = vmatpush1.bf16.msra.mxu0 %v2395
    %2539 = vmatprep.subr.bf16.mxu0 0
    %2540 = vmatpush1.bf16.msra.mxu0 %v2396
    %2541 = vmatprep.mubr.bf16.mxu0 %v1303
    %2542 = vmatmul.mubr.bf16.gmra.mrb[0].mxu0 %v1302
    %v2543 = vpop.f32.mrb[0].mxu0
    %v2544 = vadd.f32 %v2123, %v2543
    %v2545 = vpop.f32.mrb[0].mxu0
    %v2546 = vpop.f32.mrb[0].mxu0
    %v2547 = vpop.f32.mrb[0].mxu0
    %2548 = vdwg.mxu0
    %2549 = vmatprep.subr.bf16.mxu0 0
    %2550 = vmatpush1.bf16.msra.mxu0 %v2397
    %2551 = vmatprep.subr.bf16.mxu0 0
    %2552 = vmatpush1.bf16.msra.mxu0 %v2398
    %2553 = vmatprep.subr.bf16.mxu0 0
    %2554 = vmatpush1.bf16.msra.mxu0 %v2399
    %2555 = vmatprep.subr.bf16.mxu0 0
    %2556 = vmatpush1.bf16.msra.mxu0 %v2400
    %2557 = vmatprep.subr.bf16.mxu0 0
    %2558 = vmatpush1.bf16.msra.mxu0 %v2401
    %2559 = vmatprep.subr.bf16.mxu0 0
    %2560 = vmatpush1.bf16.msra.mxu0 %v2402
    %2561 = vmatprep.subr.bf16.mxu0 0
    %2562 = vmatpush1.bf16.msra.mxu0 %v2403
    %2563 = vmatprep.subr.bf16.mxu0 0
    %2564 = vmatpush1.bf16.msra.mxu0 %v2404
    %2565 = vmatprep.subr.bf16.mxu0 0
    %2566 = vmatpush1.bf16.msra.mxu0 %v2405
    %2567 = vmatprep.subr.bf16.mxu0 0
    %2568 = vmatpush1.bf16.msra.mxu0 %v2406
    %2569 = vmatprep.subr.bf16.mxu0 0
    %2570 = vmatpush1.bf16.msra.mxu0 %v2407
    %2571 = vmatprep.subr.bf16.mxu0 0
    %2572 = vmatpush1.bf16.msra.mxu0 %v2408
    %2573 = vmatprep.subr.bf16.mxu0 0
    %2574 = vmatpush1.bf16.msra.mxu0 %v2409
    %2575 = vmatprep.subr.bf16.mxu0 0
    %2576 = vmatpush1.bf16.msra.mxu0 %v2410
    %2577 = vmatprep.subr.bf16.mxu0 0
    %2578 = vmatpush1.bf16.msra.mxu0 %v2411
    %2579 = vmatprep.subr.bf16.mxu0 0
    %2580 = vmatpush1.bf16.msra.mxu0 %v2412
    %2581 = vmatprep.mubr.bf16.mxu0 %v1305
    %2582 = vmatmul.mubr.bf16.gmra.mrb[0].mxu0 %v1304
    %v2583 = vpop.f32.mrb[0].mxu0
    %v2584 = vadd.f32 %v2544, %v2583
    %v2585 = vpop.f32.mrb[0].mxu0
    %v2586 = vpop.f32.mrb[0].mxu0
    %v2587 = vpop.f32.mrb[0].mxu0
    %2588 = vdwg.mxu0
    %2589 = vmatprep.subr.bf16.mxu0 0
    %2590 = vmatpush1.bf16.msra.mxu0 %v2413
    %2591 = vmatprep.subr.bf16.mxu0 0
    %2592 = vmatpush1.bf16.msra.mxu0 %v2414
    %2593 = vmatprep.subr.bf16.mxu0 0
    %2594 = vmatpush1.bf16.msra.mxu0 %v2415
    %2595 = vmatprep.subr.bf16.mxu0 0
    %2596 = vmatpush1.bf16.msra.mxu0 %v2416
    %2597 = vmatprep.subr.bf16.mxu0 0
    %2598 = vmatpush1.bf16.msra.mxu0 %v2417
    %2599 = vmatprep.subr.bf16.mxu0 0
    %2600 = vmatpush1.bf16.msra.mxu0 %v2418
    %2601 = vmatprep.subr.bf16.mxu0 0
    %2602 = vmatpush1.bf16.msra.mxu0 %v2419
    %2603 = vmatprep.subr.bf16.mxu0 0
    %2604 = vmatpush1.bf16.msra.mxu0 %v2420
    %2605 = vmatprep.subr.bf16.mxu0 0
    %2606 = vmatpush1.bf16.msra.mxu0 %v2421
    %2607 = vmatprep.subr.bf16.mxu0 0
    %2608 = vmatpush1.bf16.msra.mxu0 %v2422
    %2609 = vmatprep.subr.bf16.mxu0 0
    %2610 = vmatpush1.bf16.msra.mxu0 %v2423
    %2611 = vmatprep.subr.bf16.mxu0 0
    %2612 = vmatpush1.bf16.msra.mxu0 %v2424
    %2613 = vmatprep.subr.bf16.mxu0 0
    %2614 = vmatpush1.bf16.msra.mxu0 %v2425
    %2615 = vmatprep.subr.bf16.mxu0 0
    %2616 = vmatpush1.bf16.msra.mxu0 %v2426
    %2617 = vmatprep.subr.bf16.mxu0 0
    %2618 = vmatpush1.bf16.msra.mxu0 %v2427
    %2619 = vmatprep.subr.bf16.mxu0 0
    %2620 = vmatpush1.bf16.msra.mxu0 %v2428
    %2621 = vmatprep.mubr.bf16.mxu0 %v1307
    %2622 = vmatmul.mubr.bf16.gmra.mrb[0].mxu0 %v1306
    %v2623 = vpop.f32.mrb[0].mxu0
    %v2624 = vadd.f32 %v2584, %v2623
    %v2625 = vpop.f32.mrb[0].mxu0
    %v2626 = vpop.f32.mrb[0].mxu0
    %v2627 = vpop.f32.mrb[0].mxu0
    %2628 = vdwg.mxu0
    %2629 = vmatprep.subr.bf16.mxu0 0
    %2630 = vmatpush1.bf16.msra.mxu0 %v2429
    %2631 = vmatprep.subr.bf16.mxu0 0
    %2632 = vmatpush1.bf16.msra.mxu0 %v2430
    %2633 = vmatprep.subr.bf16.mxu0 0
    %2634 = vmatpush1.bf16.msra.mxu0 %v2431
    %2635 = vmatprep.subr.bf16.mxu0 0
    %2636 = vmatpush1.bf16.msra.mxu0 %v2432
    %2637 = vmatprep.subr.bf16.mxu0 0
    %2638 = vmatpush1.bf16.msra.mxu0 %v2433
    %2639 = vmatprep.subr.bf16.mxu0 0
    %2640 = vmatpush1.bf16.msra.mxu0 %v2434
    %2641 = vmatprep.subr.bf16.mxu0 0
    %2642 = vmatpush1.bf16.msra.mxu0 %v2435
    %2643 = vmatprep.subr.bf16.mxu0 0
    %2644 = vmatpush1.bf16.msra.mxu0 %v2436
    %2645 = vmatprep.subr.bf16.mxu0 0
    %2646 = vmatpush1.bf16.msra.mxu0 %v2437
    %2647 = vmatprep.subr.bf16.mxu0 0
    %2648 = vmatpush1.bf16.msra.mxu0 %v2438
    %2649 = vmatprep.subr.bf16.mxu0 0
    %2650 = vmatpush1.bf16.msra.mxu0 %v2439
    %2651 = vmatprep.subr.bf16.mxu0 0
    %2652 = vmatpush1.bf16.msra.mxu0 %v2440
    %2653 = vmatprep.subr.bf16.mxu0 0
    %2654 = vmatpush1.bf16.msra.mxu0 %v2441
    %2655 = vmatprep.subr.bf16.mxu0 0
    %2656 = vmatpush1.bf16.msra.mxu0 %v2442
    %2657 = vmatprep.subr.bf16.mxu0 0
    %2658 = vmatpush1.bf16.msra.mxu0 %v2443
    %2659 = vmatprep.subr.bf16.mxu0 0
    %2660 = vmatpush1.bf16.msra.mxu0 %v2444
    %2661 = vmatprep.mubr.bf16.mxu0 %v1309
    %2662 = vmatmul.mubr.bf16.gmra.mrb[0].mxu0 %v1308
    %v2663 = vpop.f32.mrb[0].mxu0
    %v2664 = vadd.f32 %v2624, %v2663
    %v2665 = vpop.f32.mrb[0].mxu0
    %v2666 = vpop.f32.mrb[0].mxu0
    %v2667 = vpop.f32.mrb[0].mxu0
    %2668 = vdwg.mxu0
    %2669 = vst [vmem:[#allocation11] sm:$0xff] %v95
    %v2670 = vmul.f32 %v1989, 1.442695
    %v2671 = vpow.pop %v2670
    %v2672 = vmul.f32 %v96, %v2671
    %v2673 = vadd.f32 %v2672, %v2664
    %2674 = vst [vmem:[#allocation11 + $0x8] sm:$0xff] %v2673
    %2675 = vmatprep.subr.mxu0 0.0
    %2676 = vmatpush1.xpose.msra.mxu0 %v1989
    %2677 = vmatprep.subr.mxu0 0.0
    %2678 = vmatpush1.xpose.msra.mxu0 0.0
    %2679 = vmatprep.subr.mxu0 0.0
    %2680 = vmatpush1.xpose.msra.mxu0 0.0
    %2681 = vmatprep.subr.mxu0 0.0
    %2682 = vmatpush1.xpose.msra.mxu0 0.0
    %2683 = vmatprep.subr.mxu0 0.0
    %2684 = vmatpush1.xpose.msra.mxu0 0.0
    %2685 = vmatprep.subr.mxu0 0.0
    %2686 = vmatpush1.xpose.msra.mxu0 0.0
    %2687 = vmatprep.subr.mxu0 0.0
    %2688 = vmatpush1.xpose.msra.mxu0 0.0
    %2689 = vmatprep.subr.mxu0 0.0
    %2690 = vmatpush1.xpose.msra.mxu0 0.0
    %2691 = vmatprep.subr.mxu0 0.0
    %2692 = vmatpush1.xpose.msra.mxu0 0.0
    %2693 = vmatprep.subr.mxu0 0.0
    %2694 = vmatpush1.xpose.msra.mxu0 0.0
    %2695 = vmatprep.subr.mxu0 0.0
    %2696 = vmatpush1.xpose.msra.mxu0 0.0
    %2697 = vmatprep.subr.mxu0 0.0
    %2698 = vmatpush1.xpose.msra.mxu0 0.0
    %2699 = vmatprep.subr.mxu0 0.0
    %2700 = vmatpush1.xpose.msra.mxu0 0.0
    %2701 = vmatprep.subr.mxu0 0.0
    %2702 = vmatpush1.xpose.msra.mxu0 0.0
    %2703 = vmatprep.subr.mxu0 0.0
    %2704 = vmatpush1.xpose.msra.mxu0 0.0
    %2705 = vmatprep.subr.mxu0 0.0
    %2706 = vmatpush1.xpose.msra.mxu0 0.0
    %2707 = vmatprep.subr.mxu0 0.0
    %2708 = vmatpush1.xpose.msra.mxu0 0.0
    %2709 = vmatprep.subr.mxu0 0.0
    %2710 = vmatpush1.xpose.msra.mxu0 0.0
    %2711 = vmatprep.subr.mxu0 0.0
    %2712 = vmatpush1.xpose.msra.mxu0 0.0
    %2713 = vmatprep.subr.mxu0 0.0
    %2714 = vmatpush1.xpose.msra.mxu0 0.0
    %2715 = vmatprep.subr.mxu0 0.0
    %2716 = vmatpush1.xpose.msra.mxu0 0.0
    %2717 = vmatprep.subr.mxu0 0.0
    %2718 = vmatpush1.xpose.msra.mxu0 0.0
    %2719 = vmatprep.subr.mxu0 0.0
    %2720 = vmatpush1.xpose.msra.mxu0 0.0
    %2721 = vmatprep.subr.mxu0 0.0
    %2722 = vmatpush1.xpose.msra.mxu0 0.0
    %2723 = vmatprep.subr.mxu0 0.0
    %2724 = vmatpush1.xpose.msra.mxu0 0.0
    %2725 = vmatprep.subr.mxu0 0.0
    %2726 = vmatpush1.xpose.msra.mxu0 0.0
    %2727 = vmatprep.subr.mxu0 0.0
    %2728 = vmatpush1.xpose.msra.mxu0 0.0
    %2729 = vmatprep.subr.mxu0 0.0
    %2730 = vmatpush1.xpose.msra.mxu0 0.0
    %2731 = vmatprep.subr.mxu0 0.0
    %2732 = vmatpush1.xpose.msra.mxu0 0.0
    %2733 = vmatprep.subr.mxu0 0.0
    %2734 = vmatpush1.xpose.msra.mxu0 0.0
    %2735 = vmatprep.subr.mxu0 0.0
    %2736 = vmatpush1.xpose.msra.mxu0 0.0
    %2737 = vmatprep.subr.mxu0 0.0
    %2738 = vmatpush1.xpose.msra.mxu0 0.0
    %2739 = vmatprep.mubr.f32.mxu0 0.0
    %2740 = vmatmul.mubr.f32.gmra.mrb[0].mxu0 1.0
    %v2741 = vpop.f32.mrb[0].mxu0
    %v2742 = vadd.f32 0.0, %v2741
    %v2743 = vpop.f32.mrb[0].mxu0
    %2744 = vdwg.mxu0
    %vm2745 = vcmask 57344
    %2746 = vst.msk [vmem:[#allocation12] sm:$0x1] %vm2745, %v2742
    // Predicated region
    $region50: #{tpu_custom_call.1} parent=1 // pred_check
      _
    $region51: #{tpu_custom_call.1} parent=1 // pred_check_branch
      %2748 = sbr.rel (0) target = $region53
    $region52: #{tpu_custom_call.1} parent=1 // pred_region
      %s2750 = ssub.s32 256, 256
      %2751 = vsyncadd [#allocation4], %s2750
      %s2753 = sshll.u32 [#allocation11], 4
      %s2754 = int_to_ptr.vmem [resolvable:$true] %s2753
      %2756 = dma.vmem_to_hbm [thread:$0]  %s2754, 256, %s7, [#allocation4]
    $region53: #{tpu_custom_call.1} parent=1 // pred_fallthru
      _
    // Predicated region
    $region54: #{tpu_custom_call.1} parent=1 // pred_check
      _
    $region55: #{tpu_custom_call.1} parent=1 // pred_check_branch
      %2758 = sbr.rel (0) target = $region57
    $region56: #{tpu_custom_call.1} parent=1 // pred_region
      %s2760 = ssub.s32 16, 16
      %2761 = vsyncadd [#allocation13], %s2760
      %s2763 = sshll.u32 [#allocation12], 4
      %s2764 = int_to_ptr.vmem [resolvable:$true] %s2763
      %2766 = dma.vmem_to_hbm [thread:$0]  %s2764, 16, %s8, [#allocation13]
    $region57: #{tpu_custom_call.1} parent=1 // pred_fallthru
      _
    // Predicated region
    $region58: #{tpu_custom_call.1} parent=1 // pred_check
      _
    $region59: #{tpu_custom_call.1} parent=1 // pred_check_branch
      %2768 = sbr.rel (0) target = $region61
    $region60: #{tpu_custom_call.1} parent=1 // pred_region
      %2769 = dma.done [#allocation4], 256
    $region61: #{tpu_custom_call.1} parent=1 // pred_fallthru
      _
    // Predicated region
    $region62: #{tpu_custom_call.1} parent=1 // pred_check
      _
    $region63: #{tpu_custom_call.1} parent=1 // pred_check_branch
      %2771 = sbr.rel (0) target = $region65
    $region64: #{tpu_custom_call.1} parent=1 // pred_region
      %2772 = dma.done [#allocation13], 16
    $region65: #{tpu_custom_call.1} parent=1 // pred_fallthru
      _
    %2773 = vsyncpa [#allocation3], 1
    %2774 = vsyncpa [#allocation6], 1
    %2775 = vsyncpa [#allocation9], 1
    %2776 = vsyncpa [#allocation4], 1
    %2777 = vsyncpa [#allocation13], 1

</llo_original>
